<compile_context>
chip_gen: v5e
topology: v5e:2x2
jax: 0.10.0
libtpu: 0.0.40
codegen_flags: <defaults>
</compile_context>

<pallas_src>
import jax
import jax.numpy as jnp
from jax.experimental import pallas as pl
from jax.experimental.pallas import tpu as pltpu

_LANE = 128            # lane width / MXU-friendly padding target
_NEG_LARGE = -1e30     # "minus infinity" bias for padded class columns


def _round_up(n, m):
    return (n + m - 1) // m * m


def _tile_budget():
    """(max_tile_b, vmem_limit_bytes), sized per TPU generation's VMEM."""
    try:
        vmem_cap = pltpu.get_tpu_info().vmem_capacity_bytes
    except Exception:
        vmem_cap = 64 << 20                      # conservative (v7x-sized) default
    if vmem_cap >= (100 << 20):                  # v5e / v6e: 128 MiB per TC
        return 2048, 96 << 20
    return 768, 48 << 20                         # v7x: 64 MiB per TC


def _mlp_softmax_kernel(x_ref, w1_ref, b1_ref, w2_ref, b2_ref, w3_ref, b3_ref,
                        o_ref):
    # x streams in as f32; cast to bf16 in VMEM (VPU cast hides under the DMA).
    x = x_ref[...].astype(jnp.bfloat16)                    # (TB, F) bf16

    # input_layer: bf16 MXU matmul, f32 accumulation, f32 bias add
    h1 = jnp.dot(x, w1_ref[...], preferred_element_type=jnp.float32)
    h1 = h1 + b1_ref[...]

    # hidden_layer + ReLU (f32: tiny vs. layer 1, keeps numerics tight)
    h2 = jnp.dot(h1, w2_ref[...], preferred_element_type=jnp.float32)
    h2 = jnp.maximum(h2 + b2_ref[...], 0.0)

    # classifier (padded class columns carry a -1e30 bias -> exp underflows to 0)
    logits = jnp.dot(h2, w3_ref[...], preferred_element_type=jnp.float32)
    logits = logits + b3_ref[...]

    # numerically-stable softmax over the (lane-dense, 128-padded) class dim.
    # Exact division (not approx reciprocal) so rows sum to 1 at f32 precision.
    m = jnp.max(logits, axis=-1, keepdims=True)
    e = jnp.exp(logits - m)
    denom = jnp.sum(e, axis=-1, keepdims=True)
    o_ref[...] = (e / denom).astype(o_ref.dtype)


@jax.jit
def logistic_regression_relu(x, w1, b1, w2, b2, w3, b3):
    """x: (B, C, H, W) f32. Weights stored as (in, out), biases as (1, out)."""
    b = x.shape[0]
    x2d = x.reshape(b, -1)                                 # free bitcast, stays f32
    in_feat = x2d.shape[1]
    hidden = w1.shape[1]
    cls_num = w3.shape[1]

    # --- lane-dense padding of the narrow dims (64 -> 128, 10 -> 128) ---
    hid_p = _round_up(hidden, _LANE)
    cls_p = _round_up(cls_num, _LANE)

    w1p = jnp.zeros((in_feat, hid_p), jnp.bfloat16).at[:, :hidden].set(
        w1.astype(jnp.bfloat16))
    b1p = jnp.zeros((1, hid_p), jnp.float32).at[:, :hidden].set(b1)
    w2p = jnp.zeros((hid_p, hid_p), jnp.float32).at[:hidden, :hidden].set(w2)
    b2p = jnp.zeros((1, hid_p), jnp.float32).at[:, :hidden].set(b2)
    w3p = jnp.zeros((hid_p, cls_p), jnp.float32).at[:hidden, :cls_num].set(w3)
    b3p = jnp.full((1, cls_p), _NEG_LARGE, jnp.float32).at[:, :cls_num].set(b3)

    # --- batch tiling: x streams in TILE_B-row tiles, weights stay resident.
    # No batch padding: cdiv grid + Pallas masking of the partial last block.
    max_tile_b, vmem_limit = _tile_budget()
    tile_b = min(max_tile_b, _round_up(b, 8))              # f32 stream -> 8-row sublane
    nb = pl.cdiv(b, tile_b)

    cost = pl.CostEstimate(
        flops=2 * b * (in_feat * hid_p + hid_p * hid_p + hid_p * cls_p),
        transcendentals=b * cls_p,
        bytes_accessed=(4 * x2d.size + 2 * w1p.size
                        + 4 * (w2p.size + w3p.size
                               + b1p.size + b2p.size + b3p.size)
                        + 4 * b * cls_p),
    )

    out = pl.pallas_call(
        _mlp_softmax_kernel,
        out_shape=jax.ShapeDtypeStruct((b, cls_p), jnp.float32),
        grid=(nb,),
        in_specs=[
            pl.BlockSpec((tile_b, in_feat), lambda i: (i, 0)),   # x: streamed (f32)
            pl.BlockSpec((in_feat, hid_p), lambda i: (0, 0)),    # weights: resident
            pl.BlockSpec((1, hid_p), lambda i: (0, 0)),
            pl.BlockSpec((hid_p, hid_p), lambda i: (0, 0)),
            pl.BlockSpec((1, hid_p), lambda i: (0, 0)),
            pl.BlockSpec((hid_p, cls_p), lambda i: (0, 0)),
            pl.BlockSpec((1, cls_p), lambda i: (0, 0)),
        ],
        out_specs=pl.BlockSpec((tile_b, cls_p), lambda i: (i, 0)),
        compiler_params=pltpu.CompilerParams(
            dimension_semantics=("parallel",),
            vmem_limit_bytes=vmem_limit,
        ),
        cost_estimate=cost,
    )(x2d, w1p, b1p, w2p, b2p, w3p, b3p)

    # drop the padded (zero-probability) class columns
    return out[:, :cls_num]


def _init_linear(key, fan_in, fan_out):
    """PyTorch nn.Linear-style init: U(-1/sqrt(fan_in), 1/sqrt(fan_in)).

    Weight returned as (fan_in, fan_out) (already transposed for x @ W),
    bias as (1, fan_out).
    """
    kw, kb = jax.random.split(key)
    bound = 1.0 / jnp.sqrt(fan_in)
    w = jax.random.uniform(kw, (fan_in, fan_out), jnp.float32, -bound, bound)
    b = jax.random.uniform(kb, (1, fan_out), jnp.float32, -bound, bound)
    return w, b


if __name__ == "__main__":
    cls_num, in_feat, hidden = 10, 3 * 32 * 32, 64
    batch = 2

    key = jax.random.PRNGKey(0)
    kx, k1, k2, k3 = jax.random.split(key, 4)

    x = jax.random.normal(kx, (batch, 3, 32, 32), jnp.float32)   # NCHW
    w1, b1 = _init_linear(k1, in_feat, hidden)
    w2, b2 = _init_linear(k2, hidden, hidden)
    w3, b3 = _init_linear(k3, hidden, cls_num)

    out = logistic_regression_relu(x, w1, b1, w2, b2, w3, b3)
    out = jax.block_until_ready(out)

    # Reference matching the kernel's numerics (bf16 x/W1 matmul, f32 elsewhere).
    x2d = x.reshape(batch, -1)
    h1 = jnp.dot(x2d.astype(jnp.bfloat16), w1.astype(jnp.bfloat16),
                 preferred_element_type=jnp.float32) + b1
    h2 = jnp.maximum(jnp.dot(h1, w2, preferred_element_type=jnp.float32) + b2, 0.0)
    logits = jnp.dot(h2, w3, preferred_element_type=jnp.float32) + b3
    ref = jax.nn.softmax(logits, axis=-1)

    assert out.shape == (batch, cls_num)
    assert jnp.allclose(out, ref, atol=2e-3, rtol=2e-3), \
        float(jnp.max(jnp.abs(out - ref)))
    assert jnp.allclose(jnp.sum(out, axis=-1), 1.0, atol=1e-3)

    print("KERNEL_OK")
</pallas_src>

<mosaic_0001>
module attributes {stable_mosaic.version = 11 : i64} {
  func.func @_mlp_softmax_kernel(%arg0: i32, %arg1: memref<8x3072xf32, #tpu.memory_space<vmem>>, %arg2: memref<3072x128xbf16, #tpu.memory_space<vmem>>, %arg3: memref<1x128xf32, #tpu.memory_space<vmem>>, %arg4: memref<128x128xf32, #tpu.memory_space<vmem>>, %arg5: memref<1x128xf32, #tpu.memory_space<vmem>>, %arg6: memref<128x128xf32, #tpu.memory_space<vmem>>, %arg7: memref<1x128xf32, #tpu.memory_space<vmem>>, %arg8: memref<8x128xf32, #tpu.memory_space<vmem>>) attributes {dimension_semantics = [#tpu.dimension_semantics<parallel>], iteration_bounds = array<i64: 1>, scalar_prefetch = 0 : i64, scratch_operands = 0 : i64, tpu.core_type = #tpu.core_type<tc>, window_params = [{transform_indices = @transform_0, window_bounds = array<i64: 8, 3072>}, {pipeline_mode = #tpu.pipeline_mode<synchronous>, transform_indices = @transform_1, window_bounds = array<i64: 3072, 128>}, {pipeline_mode = #tpu.pipeline_mode<synchronous>, transform_indices = @transform_2, window_bounds = array<i64: 1, 128>}, {pipeline_mode = #tpu.pipeline_mode<synchronous>, transform_indices = @transform_3, window_bounds = array<i64: 128, 128>}, {pipeline_mode = #tpu.pipeline_mode<synchronous>, transform_indices = @transform_4, window_bounds = array<i64: 1, 128>}, {pipeline_mode = #tpu.pipeline_mode<synchronous>, transform_indices = @transform_5, window_bounds = array<i64: 128, 128>}, {pipeline_mode = #tpu.pipeline_mode<synchronous>, transform_indices = @transform_6, window_bounds = array<i64: 1, 128>}, {transform_indices = @transform_7, window_bounds = array<i64: 8, 128>}]} {
    %c0 = arith.constant 0 : index
    %c0_0 = arith.constant 0 : index
    %0 = vector.load %arg1[%c0, %c0_0] : memref<8x3072xf32, #tpu.memory_space<vmem>>, vector<8x3072xf32>
    %1 = arith.truncf %0 : vector<8x3072xf32> to vector<8x3072xbf16>
    %c0_1 = arith.constant 0 : index
    %c0_2 = arith.constant 0 : index
    %2 = vector.load %arg2[%c0_1, %c0_2] : memref<3072x128xbf16, #tpu.memory_space<vmem>>, vector<3072x128xbf16>
    %cst = arith.constant dense<0.000000e+00> : vector<8x128xf32>
    %3 = tpu.matmul %1, %2, %cst {dimension_numbers = #tpu.dot_dimension_numbers<[1], [0], [0], [1], [0, 0, 1, 1], [], []>} : vector<8x3072xbf16>, vector<3072x128xbf16>, vector<8x128xf32> -> vector<8x128xf32>
    %c0_3 = arith.constant 0 : index
    %c0_4 = arith.constant 0 : index
    %4 = vector.load %arg3[%c0_3, %c0_4] : memref<1x128xf32, #tpu.memory_space<vmem>>, vector<1x128xf32>
    %5 = vector.broadcast %4 : vector<1x128xf32> to vector<8x128xf32>
    %6 = arith.addf %3, %5 : vector<8x128xf32>
    %c0_5 = arith.constant 0 : index
    %c0_6 = arith.constant 0 : index
    %7 = vector.load %arg4[%c0_5, %c0_6] : memref<128x128xf32, #tpu.memory_space<vmem>>, vector<128x128xf32>
    %cst_7 = arith.constant dense<0.000000e+00> : vector<8x128xf32>
    %8 = tpu.matmul %6, %7, %cst_7 {dimension_numbers = #tpu.dot_dimension_numbers<[1], [0], [0], [1], [0, 0, 1, 1], [], []>} : vector<8x128xf32>, vector<128x128xf32>, vector<8x128xf32> -> vector<8x128xf32>
    %c0_8 = arith.constant 0 : index
    %c0_9 = arith.constant 0 : index
    %9 = vector.load %arg5[%c0_8, %c0_9] : memref<1x128xf32, #tpu.memory_space<vmem>>, vector<1x128xf32>
    %10 = vector.broadcast %9 : vector<1x128xf32> to vector<8x128xf32>
    %11 = arith.addf %8, %10 : vector<8x128xf32>
    %cst_10 = arith.constant 0.000000e+00 : f32
    %12 = vector.broadcast %cst_10 : f32 to vector<8x128xf32>
    %13 = arith.maximumf %11, %12 : vector<8x128xf32>
    %c0_11 = arith.constant 0 : index
    %c0_12 = arith.constant 0 : index
    %14 = vector.load %arg6[%c0_11, %c0_12] : memref<128x128xf32, #tpu.memory_space<vmem>>, vector<128x128xf32>
    %cst_13 = arith.constant dense<0.000000e+00> : vector<8x128xf32>
    %15 = tpu.matmul %13, %14, %cst_13 {dimension_numbers = #tpu.dot_dimension_numbers<[1], [0], [0], [1], [0, 0, 1, 1], [], []>} : vector<8x128xf32>, vector<128x128xf32>, vector<8x128xf32> -> vector<8x128xf32>
    %c0_14 = arith.constant 0 : index
    %c0_15 = arith.constant 0 : index
    %16 = vector.load %arg7[%c0_14, %c0_15] : memref<1x128xf32, #tpu.memory_space<vmem>>, vector<1x128xf32>
    %17 = vector.broadcast %16 : vector<1x128xf32> to vector<8x128xf32>
    %18 = arith.addf %15, %17 : vector<8x128xf32>
    %cst_16 = arith.constant dense<0xFF800000> : vector<8xf32>
    %19 = vector.multi_reduction <maximumf>, %18, %cst_16 [1] : vector<8x128xf32> to vector<8xf32>
    %20 = vector.shape_cast %19 : vector<8xf32> to vector<8x1xf32>
    %21 = vector.broadcast %20 : vector<8x1xf32> to vector<8x128xf32>
    %22 = arith.subf %18, %21 : vector<8x128xf32>
    %23 = math.exp %22 : vector<8x128xf32>
    %cst_17 = arith.constant dense<0.000000e+00> : vector<8xf32>
    %24 = vector.multi_reduction <add>, %23, %cst_17 [1] : vector<8x128xf32> to vector<8xf32>
    %25 = vector.shape_cast %24 : vector<8xf32> to vector<8x1xf32>
    %26 = vector.broadcast %25 : vector<8x1xf32> to vector<8x128xf32>
    %27 = arith.divf %23, %26 : vector<8x128xf32>
    %c0_18 = arith.constant 0 : index
    %c0_19 = arith.constant 0 : index
    %28 = vector.load %arg8[%c0_18, %c0_19] : memref<8x128xf32, #tpu.memory_space<vmem>>, vector<8x128xf32>
    tpu.vector_store %arg8[%c0_18, %c0_19], %27 {strides = array<i32>} : memref<8x128xf32, #tpu.memory_space<vmem>>, vector<8x128xf32>,
    return
  }
  func.func @transform_0(%arg0: i32) -> (i32, i32) {
    %c0_i32 = arith.constant 0 : i32
    %c0_i32_0 = arith.constant 0 : i32
    return %arg0, %c0_i32 : i32, i32
  }
  func.func @transform_1(%arg0: i32) -> (i32, i32) {
    %c0_i32 = arith.constant 0 : i32
    %c0_i32_0 = arith.constant 0 : i32
    %c0_i32_1 = arith.constant 0 : i32
    return %c0_i32, %c0_i32_0 : i32, i32
  }
  func.func @transform_2(%arg0: i32) -> (i32, i32) {
    %c0_i32 = arith.constant 0 : i32
    %c0_i32_0 = arith.constant 0 : i32
    %c0_i32_1 = arith.constant 0 : i32
    return %c0_i32, %c0_i32_0 : i32, i32
  }
  func.func @transform_3(%arg0: i32) -> (i32, i32) {
    %c0_i32 = arith.constant 0 : i32
    %c0_i32_0 = arith.constant 0 : i32
    %c0_i32_1 = arith.constant 0 : i32
    return %c0_i32, %c0_i32_0 : i32, i32
  }
  func.func @transform_4(%arg0: i32) -> (i32, i32) {
    %c0_i32 = arith.constant 0 : i32
    %c0_i32_0 = arith.constant 0 : i32
    %c0_i32_1 = arith.constant 0 : i32
    return %c0_i32, %c0_i32_0 : i32, i32
  }
  func.func @transform_5(%arg0: i32) -> (i32, i32) {
    %c0_i32 = arith.constant 0 : i32
    %c0_i32_0 = arith.constant 0 : i32
    %c0_i32_1 = arith.constant 0 : i32
    return %c0_i32, %c0_i32_0 : i32, i32
  }
  func.func @transform_6(%arg0: i32) -> (i32, i32) {
    %c0_i32 = arith.constant 0 : i32
    %c0_i32_0 = arith.constant 0 : i32
    %c0_i32_1 = arith.constant 0 : i32
    return %c0_i32, %c0_i32_0 : i32, i32
  }
  func.func @transform_7(%arg0: i32) -> (i32, i32) {
    %c0_i32 = arith.constant 0 : i32
    %c0_i32_0 = arith.constant 0 : i32
    return %arg0, %c0_i32 : i32, i32
  }
}

</mosaic_0001>

<llo_original>
// kernel: logistic_regression_relu.1
$region0: #{logistic_regression_relu.1}
  #allocation0 [shape = 'u32[]', space=smem, size = 0x4, offset = 0x4, fixed_abs, tag = 'smem constant byte address 0x4 - core index']
  #allocation1 [shape = 'u32[72,128]{1,0:T(1,128)}', space=vmem, size = 0x9000, scoped, tag = 'internal scratch']
  %s0 = inlined_call_operand.vmem [shape: f32[2,3072], index: 0, kind: input, shape index: {}]
  %s1 = inlined_call_operand.vmem [shape: bf16[3072,128], index: 1, kind: input, shape index: {}]
  %s2 = inlined_call_operand.vmem [shape: f32[1,128], index: 2, kind: input, shape index: {}]
  %s3 = inlined_call_operand.vmem [shape: f32[128,128], index: 3, kind: input, shape index: {}]
  %s4 = inlined_call_operand.vmem [shape: f32[1,128], index: 4, kind: input, shape index: {}]
  %s5 = inlined_call_operand.vmem [shape: f32[128,128], index: 5, kind: input, shape index: {}]
  %s6 = inlined_call_operand.vmem [shape: f32[1,128], index: 6, kind: input, shape index: {}]
  %s7 = inlined_call_operand.hbm [shape: f32[2,128], index: 7, kind: output, shape index: {}]
  %s8 = sld [smem:[#allocation0]]
  $region38: #{logistic_regression_relu.1} parent=0
    _
  %s10 = ssub.s32 1, %s8
  %s11 = scalar_select 0, %s10, %s8
  $region1: #{logistic_regression_relu.1} parent=0
    #allocation2 [shape = 'u8[4096]{0}', space=vmem, size = 0x1000, scoped, tag = 'output window, operand 0, single buffered']
    #allocation3 [shape = 's32[1]{0}', space=sflag, size = 0x4, scoped, tag = 'scoped memory for logistic_regression_relu.1']
    %12 = vsyncpa [#allocation3], 0
    // Predicated region
    $region2: #{logistic_regression_relu.1} parent=1 // pred_check
      _
    $region3: #{logistic_regression_relu.1} parent=1 // pred_check_branch
      %14 = sbr.rel (0) target = $region5
    $region4: #{logistic_regression_relu.1} parent=1 // pred_region
      _
    $region5: #{logistic_regression_relu.1} parent=1 // pred_fallthru
      _
    // Predicated region
    $region6: #{logistic_regression_relu.1} parent=1 // pred_check
      _
    $region7: #{logistic_regression_relu.1} parent=1 // pred_check_branch
      %16 = sbr.rel (0) target = $region9
    $region8: #{logistic_regression_relu.1} parent=1 // pred_region
      _
    $region9: #{logistic_regression_relu.1} parent=1 // pred_fallthru
      _
    // Predicated region
    $region10: #{logistic_regression_relu.1} parent=1 // pred_check
      _
    $region11: #{logistic_regression_relu.1} parent=1 // pred_check_branch
      %18 = sbr.rel (0) target = $region13
    $region12: #{logistic_regression_relu.1} parent=1 // pred_region
      _
    $region13: #{logistic_regression_relu.1} parent=1 // pred_fallthru
      _
    // Predicated region
    $region14: #{logistic_regression_relu.1} parent=1 // pred_check
      _
    $region15: #{logistic_regression_relu.1} parent=1 // pred_check_branch
      %20 = sbr.rel (0) target = $region17
    $region16: #{logistic_regression_relu.1} parent=1 // pred_region
      _
    $region17: #{logistic_regression_relu.1} parent=1 // pred_fallthru
      _
    // Predicated region
    $region18: #{logistic_regression_relu.1} parent=1 // pred_check
      _
    $region19: #{logistic_regression_relu.1} parent=1 // pred_check_branch
      %22 = sbr.rel (0) target = $region21
    $region20: #{logistic_regression_relu.1} parent=1 // pred_region
      _
    $region21: #{logistic_regression_relu.1} parent=1 // pred_fallthru
      _
    // Predicated region
    $region22: #{logistic_regression_relu.1} parent=1 // pred_check
      _
    $region23: #{logistic_regression_relu.1} parent=1 // pred_check_branch
      %24 = sbr.rel (0) target = $region25
    $region24: #{logistic_regression_relu.1} parent=1 // pred_region
      _
    $region25: #{logistic_regression_relu.1} parent=1 // pred_fallthru
      _
    // Predicated region
    $region26: #{logistic_regression_relu.1} parent=1 // pred_check
      _
    $region27: #{logistic_regression_relu.1} parent=1 // pred_check_branch
      %26 = sbr.rel (0) target = $region29
    $region28: #{logistic_regression_relu.1} parent=1 // pred_region
      _
    $region29: #{logistic_regression_relu.1} parent=1 // pred_fallthru
      _
    %v27 = vld [vmem:[%s0] sm:$0xff]
    %v28 = vld [vmem:[%s0 + $0x8] sm:$0xff]
    %v29 = vld [vmem:[%s0 + $0x10] sm:$0xff]
    %v30 = vld [vmem:[%s0 + $0x18] sm:$0xff]
    %v31 = vld [vmem:[%s0 + $0x20] sm:$0xff]
    %v32 = vld [vmem:[%s0 + $0x28] sm:$0xff]
    %v33 = vld [vmem:[%s0 + $0x30] sm:$0xff]
    %v34 = vld [vmem:[%s0 + $0x38] sm:$0xff]
    %v35 = vld [vmem:[%s0 + $0x40] sm:$0xff]
    %v36 = vld [vmem:[%s0 + $0x48] sm:$0xff]
    %v37 = vld [vmem:[%s0 + $0x50] sm:$0xff]
    %v38 = vld [vmem:[%s0 + $0x58] sm:$0xff]
    %v39 = vld [vmem:[%s0 + $0x60] sm:$0xff]
    %v40 = vld [vmem:[%s0 + $0x68] sm:$0xff]
    %v41 = vld [vmem:[%s0 + $0x70] sm:$0xff]
    %v42 = vld [vmem:[%s0 + $0x78] sm:$0xff]
    %v43 = vld [vmem:[%s0 + $0x80] sm:$0xff]
    %v44 = vld [vmem:[%s0 + $0x88] sm:$0xff]
    %v45 = vld [vmem:[%s0 + $0x90] sm:$0xff]
    %v46 = vld [vmem:[%s0 + $0x98] sm:$0xff]
    %v47 = vld [vmem:[%s0 + $0xa0] sm:$0xff]
    %v48 = vld [vmem:[%s0 + $0xa8] sm:$0xff]
    %v49 = vld [vmem:[%s0 + $0xb0] sm:$0xff]
    %v50 = vld [vmem:[%s0 + $0xb8] sm:$0xff]
    %75 = vst [vmem:[#allocation1] ss:$4 sm:$0xff] %v27
    %s76 = scalar_lea.vmem [#allocation1], 1
    %77 = vst [vmem:[%s76] ss:$4 sm:$0xff] %v33
    %s78 = scalar_lea.vmem [#allocation1], 2
    %79 = vst [vmem:[%s78] ss:$4 sm:$0xff] %v39
    %s80 = scalar_lea.vmem [#allocation1], 3
    %81 = vst [vmem:[%s80] ss:$4 sm:$0xff] %v45
    %s82 = scalar_lea.vmem [#allocation1], 32
    %83 = vst [vmem:[%s82] ss:$4 sm:$0xff] %v28
    %s84 = scalar_lea.vmem [#allocation1], 33
    %85 = vst [vmem:[%s84] ss:$4 sm:$0xff] %v34
    %s86 = scalar_lea.vmem [#allocation1], 34
    %87 = vst [vmem:[%s86] ss:$4 sm:$0xff] %v40
    %s88 = scalar_lea.vmem [#allocation1], 35
    %89 = vst [vmem:[%s88] ss:$4 sm:$0xff] %v46
    %v90 = vld.sshfl [vmem:[#allocation1] sm:$0xff pattern:$0x73625140]
    %v91 = vld.sshfl [vmem:[#allocation1 + $0x8] sm:$0xff pattern:$0x73625140]
    %v92 = vld.sshfl [vmem:[#allocation1 + $0x10] sm:$0xff pattern:$0x73625140]
    %v93 = vld.sshfl [vmem:[#allocation1 + $0x18] sm:$0xff pattern:$0x73625140]
    %v94 = vld.sshfl [vmem:[#allocation1 + $0x20] sm:$0xff pattern:$0x73625140]
    %v95 = vld.sshfl [vmem:[#allocation1 + $0x28] sm:$0xff pattern:$0x73625140]
    %v96 = vld.sshfl [vmem:[#allocation1 + $0x30] sm:$0xff pattern:$0x73625140]
    %v97 = vld.sshfl [vmem:[#allocation1 + $0x38] sm:$0xff pattern:$0x73625140]
    %98 = vst [vmem:[#allocation1] ss:$4 sm:$0xff] %v29
    %99 = vst [vmem:[%s76] ss:$4 sm:$0xff] %v35
    %100 = vst [vmem:[%s78] ss:$4 sm:$0xff] %v41
    %101 = vst [vmem:[%s80] ss:$4 sm:$0xff] %v47
    %102 = vst [vmem:[%s82] ss:$4 sm:$0xff] %v30
    %103 = vst [vmem:[%s84] ss:$4 sm:$0xff] %v36
    %104 = vst [vmem:[%s86] ss:$4 sm:$0xff] %v42
    %105 = vst [vmem:[%s88] ss:$4 sm:$0xff] %v48
    %v106 = vld.sshfl [vmem:[#allocation1] sm:$0xff pattern:$0x73625140]
    %v107 = vld.sshfl [vmem:[#allocation1 + $0x8] sm:$0xff pattern:$0x73625140]
    %v108 = vld.sshfl [vmem:[#allocation1 + $0x10] sm:$0xff pattern:$0x73625140]
    %v109 = vld.sshfl [vmem:[#allocation1 + $0x18] sm:$0xff pattern:$0x73625140]
    %v110 = vld.sshfl [vmem:[#allocation1 + $0x20] sm:$0xff pattern:$0x73625140]
    %v111 = vld.sshfl [vmem:[#allocation1 + $0x28] sm:$0xff pattern:$0x73625140]
    %v112 = vld.sshfl [vmem:[#allocation1 + $0x30] sm:$0xff pattern:$0x73625140]
    %v113 = vld.sshfl [vmem:[#allocation1 + $0x38] sm:$0xff pattern:$0x73625140]
    %114 = vst [vmem:[#allocation1] ss:$4 sm:$0xff] %v31
    %115 = vst [vmem:[%s76] ss:$4 sm:$0xff] %v37
    %116 = vst [vmem:[%s78] ss:$4 sm:$0xff] %v43
    %117 = vst [vmem:[%s80] ss:$4 sm:$0xff] %v49
    %118 = vst [vmem:[%s82] ss:$4 sm:$0xff] %v32
    %119 = vst [vmem:[%s84] ss:$4 sm:$0xff] %v38
    %120 = vst [vmem:[%s86] ss:$4 sm:$0xff] %v44
    %121 = vst [vmem:[%s88] ss:$4 sm:$0xff] %v50
    %v122 = vld.sshfl [vmem:[#allocation1] sm:$0xff pattern:$0x73625140]
    %v123 = vld.sshfl [vmem:[#allocation1 + $0x8] sm:$0xff pattern:$0x73625140]
    %v124 = vld.sshfl [vmem:[#allocation1 + $0x10] sm:$0xff pattern:$0x73625140]
    %v125 = vld.sshfl [vmem:[#allocation1 + $0x18] sm:$0xff pattern:$0x73625140]
    %v126 = vld.sshfl [vmem:[#allocation1 + $0x20] sm:$0xff pattern:$0x73625140]
    %v127 = vld.sshfl [vmem:[#allocation1 + $0x28] sm:$0xff pattern:$0x73625140]
    %v128 = vld.sshfl [vmem:[#allocation1 + $0x30] sm:$0xff pattern:$0x73625140]
    %v129 = vld.sshfl [vmem:[#allocation1 + $0x38] sm:$0xff pattern:$0x73625140]
    %v154 = vpack.c.bf16 %v90, %v90
    %v155 = vpack.c.bf16 %v91, %v91
    %v156 = vpack.c.bf16 %v92, %v92
    %v157 = vpack.c.bf16 %v93, %v93
    %v158 = vpack.c.bf16 %v94, %v94
    %v159 = vpack.c.bf16 %v95, %v95
    %v160 = vpack.c.bf16 %v96, %v96
    %v161 = vpack.c.bf16 %v97, %v97
    %v162 = vpack.c.bf16 %v106, %v106
    %v163 = vpack.c.bf16 %v107, %v107
    %v164 = vpack.c.bf16 %v108, %v108
    %v165 = vpack.c.bf16 %v109, %v109
    %v166 = vpack.c.bf16 %v110, %v110
    %v167 = vpack.c.bf16 %v111, %v111
    %v168 = vpack.c.bf16 %v112, %v112
    %v169 = vpack.c.bf16 %v113, %v113
    %v170 = vpack.c.bf16 %v122, %v122
    %v171 = vpack.c.bf16 %v123, %v123
    %v172 = vpack.c.bf16 %v124, %v124
    %v173 = vpack.c.bf16 %v125, %v125
    %v174 = vpack.c.bf16 %v126, %v126
    %v175 = vpack.c.bf16 %v127, %v127
    %v176 = vpack.c.bf16 %v128, %v128
    %v177 = vpack.c.bf16 %v129, %v129
    %v178 = vld [vmem:[%s1] sm:$0xf]
    %v179 = vld [vmem:[%s1 + $0x4] sm:$0xf]
    %v180 = vld [vmem:[%s1 + $0x8] sm:$0xf]
    %v181 = vld [vmem:[%s1 + $0xc] sm:$0xf]
    %v182 = vld [vmem:[%s1 + $0x10] sm:$0xf]
    %v183 = vld [vmem:[%s1 + $0x14] sm:$0xf]
    %v184 = vld [vmem:[%s1 + $0x18] sm:$0xf]
    %v185 = vld [vmem:[%s1 + $0x1c] sm:$0xf]
    %v186 = vld [vmem:[%s1 + $0x20] sm:$0xf]
    %v187 = vld [vmem:[%s1 + $0x24] sm:$0xf]
    %v188 = vld [vmem:[%s1 + $0x28] sm:$0xf]
    %v189 = vld [vmem:[%s1 + $0x2c] sm:$0xf]
    %v190 = vld [vmem:[%s1 + $0x30] sm:$0xf]
    %v191 = vld [vmem:[%s1 + $0x34] sm:$0xf]
    %v192 = vld [vmem:[%s1 + $0x38] sm:$0xf]
    %v193 = vld [vmem:[%s1 + $0x3c] sm:$0xf]
    %v194 = vld [vmem:[%s1 + $0x40] sm:$0xf]
    %v195 = vld [vmem:[%s1 + $0x44] sm:$0xf]
    %v196 = vld [vmem:[%s1 + $0x48] sm:$0xf]
    %v197 = vld [vmem:[%s1 + $0x4c] sm:$0xf]
    %v198 = vld [vmem:[%s1 + $0x50] sm:$0xf]
    %v199 = vld [vmem:[%s1 + $0x54] sm:$0xf]
    %v200 = vld [vmem:[%s1 + $0x58] sm:$0xf]
    %v201 = vld [vmem:[%s1 + $0x5c] sm:$0xf]
    %v202 = vld [vmem:[%s1 + $0x60] sm:$0xf]
    %v203 = vld [vmem:[%s1 + $0x64] sm:$0xf]
    %v204 = vld [vmem:[%s1 + $0x68] sm:$0xf]
    %v205 = vld [vmem:[%s1 + $0x6c] sm:$0xf]
    %v206 = vld [vmem:[%s1 + $0x70] sm:$0xf]
    %v207 = vld [vmem:[%s1 + $0x74] sm:$0xf]
    %v208 = vld [vmem:[%s1 + $0x78] sm:$0xf]
    %v209 = vld [vmem:[%s1 + $0x7c] sm:$0xf]
    %v210 = vld [vmem:[%s1 + $0x80] sm:$0xf]
    %v211 = vld [vmem:[%s1 + $0x84] sm:$0xf]
    %v212 = vld [vmem:[%s1 + $0x88] sm:$0xf]
    %v213 = vld [vmem:[%s1 + $0x8c] sm:$0xf]
    %v214 = vld [vmem:[%s1 + $0x90] sm:$0xf]
    %v215 = vld [vmem:[%s1 + $0x94] sm:$0xf]
    %v216 = vld [vmem:[%s1 + $0x98] sm:$0xf]
    %v217 = vld [vmem:[%s1 + $0x9c] sm:$0xf]
    %v218 = vld [vmem:[%s1 + $0xa0] sm:$0xf]
    %v219 = vld [vmem:[%s1 + $0xa4] sm:$0xf]
    %v220 = vld [vmem:[%s1 + $0xa8] sm:$0xf]
    %v221 = vld [vmem:[%s1 + $0xac] sm:$0xf]
    %v222 = vld [vmem:[%s1 + $0xb0] sm:$0xf]
    %v223 = vld [vmem:[%s1 + $0xb4] sm:$0xf]
    %v224 = vld [vmem:[%s1 + $0xb8] sm:$0xf]
    %v225 = vld [vmem:[%s1 + $0xbc] sm:$0xf]
    %v226 = vld [vmem:[%s1 + $0xc0] sm:$0xf]
    %v227 = vld [vmem:[%s1 + $0xc4] sm:$0xf]
    %v228 = vld [vmem:[%s1 + $0xc8] sm:$0xf]
    %v229 = vld [vmem:[%s1 + $0xcc] sm:$0xf]
    %v230 = vld [vmem:[%s1 + $0xd0] sm:$0xf]
    %v231 = vld [vmem:[%s1 + $0xd4] sm:$0xf]
    %v232 = vld [vmem:[%s1 + $0xd8] sm:$0xf]
    %v233 = vld [vmem:[%s1 + $0xdc] sm:$0xf]
    %v234 = vld [vmem:[%s1 + $0xe0] sm:$0xf]
    %v235 = vld [vmem:[%s1 + $0xe4] sm:$0xf]
    %v236 = vld [vmem:[%s1 + $0xe8] sm:$0xf]
    %v237 = vld [vmem:[%s1 + $0xec] sm:$0xf]
    %v238 = vld [vmem:[%s1 + $0xf0] sm:$0xf]
    %v239 = vld [vmem:[%s1 + $0xf4] sm:$0xf]
    %v240 = vld [vmem:[%s1 + $0xf8] sm:$0xf]
    %v241 = vld [vmem:[%s1 + $0xfc] sm:$0xf]
    %v242 = vld [vmem:[%s1 + $0x100] sm:$0xf]
    %v243 = vld [vmem:[%s1 + $0x104] sm:$0xf]
    %v244 = vld [vmem:[%s1 + $0x108] sm:$0xf]
    %v245 = vld [vmem:[%s1 + $0x10c] sm:$0xf]
    %v246 = vld [vmem:[%s1 + $0x110] sm:$0xf]
    %v247 = vld [vmem:[%s1 + $0x114] sm:$0xf]
    %v248 = vld [vmem:[%s1 + $0x118] sm:$0xf]
    %v249 = vld [vmem:[%s1 + $0x11c] sm:$0xf]
    %v250 = vld [vmem:[%s1 + $0x120] sm:$0xf]
    %v251 = vld [vmem:[%s1 + $0x124] sm:$0xf]
    %v252 = vld [vmem:[%s1 + $0x128] sm:$0xf]
    %v253 = vld [vmem:[%s1 + $0x12c] sm:$0xf]
    %v254 = vld [vmem:[%s1 + $0x130] sm:$0xf]
    %v255 = vld [vmem:[%s1 + $0x134] sm:$0xf]
    %v256 = vld [vmem:[%s1 + $0x138] sm:$0xf]
    %v257 = vld [vmem:[%s1 + $0x13c] sm:$0xf]
    %v258 = vld [vmem:[%s1 + $0x140] sm:$0xf]
    %v259 = vld [vmem:[%s1 + $0x144] sm:$0xf]
    %v260 = vld [vmem:[%s1 + $0x148] sm:$0xf]
    %v261 = vld [vmem:[%s1 + $0x14c] sm:$0xf]
    %v262 = vld [vmem:[%s1 + $0x150] sm:$0xf]
    %v263 = vld [vmem:[%s1 + $0x154] sm:$0xf]
    %v264 = vld [vmem:[%s1 + $0x158] sm:$0xf]
    %v265 = vld [vmem:[%s1 + $0x15c] sm:$0xf]
    %v266 = vld [vmem:[%s1 + $0x160] sm:$0xf]
    %v267 = vld [vmem:[%s1 + $0x164] sm:$0xf]
    %v268 = vld [vmem:[%s1 + $0x168] sm:$0xf]
    %v269 = vld [vmem:[%s1 + $0x16c] sm:$0xf]
    %v270 = vld [vmem:[%s1 + $0x170] sm:$0xf]
    %v271 = vld [vmem:[%s1 + $0x174] sm:$0xf]
    %v272 = vld [vmem:[%s1 + $0x178] sm:$0xf]
    %v273 = vld [vmem:[%s1 + $0x17c] sm:$0xf]
    %v274 = vld [vmem:[%s1 + $0x180] sm:$0xf]
    %v275 = vld [vmem:[%s1 + $0x184] sm:$0xf]
    %v276 = vld [vmem:[%s1 + $0x188] sm:$0xf]
    %v277 = vld [vmem:[%s1 + $0x18c] sm:$0xf]
    %v278 = vld [vmem:[%s1 + $0x190] sm:$0xf]
    %v279 = vld [vmem:[%s1 + $0x194] sm:$0xf]
    %v280 = vld [vmem:[%s1 + $0x198] sm:$0xf]
    %v281 = vld [vmem:[%s1 + $0x19c] sm:$0xf]
    %v282 = vld [vmem:[%s1 + $0x1a0] sm:$0xf]
    %v283 = vld [vmem:[%s1 + $0x1a4] sm:$0xf]
    %v284 = vld [vmem:[%s1 + $0x1a8] sm:$0xf]
    %v285 = vld [vmem:[%s1 + $0x1ac] sm:$0xf]
    %v286 = vld [vmem:[%s1 + $0x1b0] sm:$0xf]
    %v287 = vld [vmem:[%s1 + $0x1b4] sm:$0xf]
    %v288 = vld [vmem:[%s1 + $0x1b8] sm:$0xf]
    %v289 = vld [vmem:[%s1 + $0x1bc] sm:$0xf]
    %v290 = vld [vmem:[%s1 + $0x1c0] sm:$0xf]
    %v291 = vld [vmem:[%s1 + $0x1c4] sm:$0xf]
    %v292 = vld [vmem:[%s1 + $0x1c8] sm:$0xf]
    %v293 = vld [vmem:[%s1 + $0x1cc] sm:$0xf]
    %v294 = vld [vmem:[%s1 + $0x1d0] sm:$0xf]
    %v295 = vld [vmem:[%s1 + $0x1d4] sm:$0xf]
    %v296 = vld [vmem:[%s1 + $0x1d8] sm:$0xf]
    %v297 = vld [vmem:[%s1 + $0x1dc] sm:$0xf]
    %v298 = vld [vmem:[%s1 + $0x1e0] sm:$0xf]
    %v299 = vld [vmem:[%s1 + $0x1e4] sm:$0xf]
    %v300 = vld [vmem:[%s1 + $0x1e8] sm:$0xf]
    %v301 = vld [vmem:[%s1 + $0x1ec] sm:$0xf]
    %v302 = vld [vmem:[%s1 + $0x1f0] sm:$0xf]
    %v303 = vld [vmem:[%s1 + $0x1f4] sm:$0xf]
    %v304 = vld [vmem:[%s1 + $0x1f8] sm:$0xf]
    %v305 = vld [vmem:[%s1 + $0x1fc] sm:$0xf]
    %v306 = vld [vmem:[%s1 + $0x200] sm:$0xf]
    %v307 = vld [vmem:[%s1 + $0x204] sm:$0xf]
    %v308 = vld [vmem:[%s1 + $0x208] sm:$0xf]
    %v309 = vld [vmem:[%s1 + $0x20c] sm:$0xf]
    %v310 = vld [vmem:[%s1 + $0x210] sm:$0xf]
    %v311 = vld [vmem:[%s1 + $0x214] sm:$0xf]
    %v312 = vld [vmem:[%s1 + $0x218] sm:$0xf]
    %v313 = vld [vmem:[%s1 + $0x21c] sm:$0xf]
    %v314 = vld [vmem:[%s1 + $0x220] sm:$0xf]
    %v315 = vld [vmem:[%s1 + $0x224] sm:$0xf]
    %v316 = vld [vmem:[%s1 + $0x228] sm:$0xf]
    %v317 = vld [vmem:[%s1 + $0x22c] sm:$0xf]
    %v318 = vld [vmem:[%s1 + $0x230] sm:$0xf]
    %v319 = vld [vmem:[%s1 + $0x234] sm:$0xf]
    %v320 = vld [vmem:[%s1 + $0x238] sm:$0xf]
    %v321 = vld [vmem:[%s1 + $0x23c] sm:$0xf]
    %v322 = vld [vmem:[%s1 + $0x240] sm:$0xf]
    %v323 = vld [vmem:[%s1 + $0x244] sm:$0xf]
    %v324 = vld [vmem:[%s1 + $0x248] sm:$0xf]
    %v325 = vld [vmem:[%s1 + $0x24c] sm:$0xf]
    %v326 = vld [vmem:[%s1 + $0x250] sm:$0xf]
    %v327 = vld [vmem:[%s1 + $0x254] sm:$0xf]
    %v328 = vld [vmem:[%s1 + $0x258] sm:$0xf]
    %v329 = vld [vmem:[%s1 + $0x25c] sm:$0xf]
    %v330 = vld [vmem:[%s1 + $0x260] sm:$0xf]
    %v331 = vld [vmem:[%s1 + $0x264] sm:$0xf]
    %v332 = vld [vmem:[%s1 + $0x268] sm:$0xf]
    %v333 = vld [vmem:[%s1 + $0x26c] sm:$0xf]
    %v334 = vld [vmem:[%s1 + $0x270] sm:$0xf]
    %v335 = vld [vmem:[%s1 + $0x274] sm:$0xf]
    %v336 = vld [vmem:[%s1 + $0x278] sm:$0xf]
    %v337 = vld [vmem:[%s1 + $0x27c] sm:$0xf]
    %v338 = vld [vmem:[%s1 + $0x280] sm:$0xf]
    %v339 = vld [vmem:[%s1 + $0x284] sm:$0xf]
    %v340 = vld [vmem:[%s1 + $0x288] sm:$0xf]
    %v341 = vld [vmem:[%s1 + $0x28c] sm:$0xf]
    %v342 = vld [vmem:[%s1 + $0x290] sm:$0xf]
    %v343 = vld [vmem:[%s1 + $0x294] sm:$0xf]
    %v344 = vld [vmem:[%s1 + $0x298] sm:$0xf]
    %v345 = vld [vmem:[%s1 + $0x29c] sm:$0xf]
    %v346 = vld [vmem:[%s1 + $0x2a0] sm:$0xf]
    %v347 = vld [vmem:[%s1 + $0x2a4] sm:$0xf]
    %v348 = vld [vmem:[%s1 + $0x2a8] sm:$0xf]
    %v349 = vld [vmem:[%s1 + $0x2ac] sm:$0xf]
    %v350 = vld [vmem:[%s1 + $0x2b0] sm:$0xf]
    %v351 = vld [vmem:[%s1 + $0x2b4] sm:$0xf]
    %v352 = vld [vmem:[%s1 + $0x2b8] sm:$0xf]
    %v353 = vld [vmem:[%s1 + $0x2bc] sm:$0xf]
    %v354 = vld [vmem:[%s1 + $0x2c0] sm:$0xf]
    %v355 = vld [vmem:[%s1 + $0x2c4] sm:$0xf]
    %v356 = vld [vmem:[%s1 + $0x2c8] sm:$0xf]
    %v357 = vld [vmem:[%s1 + $0x2cc] sm:$0xf]
    %v358 = vld [vmem:[%s1 + $0x2d0] sm:$0xf]
    %v359 = vld [vmem:[%s1 + $0x2d4] sm:$0xf]
    %v360 = vld [vmem:[%s1 + $0x2d8] sm:$0xf]
    %v361 = vld [vmem:[%s1 + $0x2dc] sm:$0xf]
    %v362 = vld [vmem:[%s1 + $0x2e0] sm:$0xf]
    %v363 = vld [vmem:[%s1 + $0x2e4] sm:$0xf]
    %v364 = vld [vmem:[%s1 + $0x2e8] sm:$0xf]
    %v365 = vld [vmem:[%s1 + $0x2ec] sm:$0xf]
    %v366 = vld [vmem:[%s1 + $0x2f0] sm:$0xf]
    %v367 = vld [vmem:[%s1 + $0x2f4] sm:$0xf]
    %v368 = vld [vmem:[%s1 + $0x2f8] sm:$0xf]
    %v369 = vld [vmem:[%s1 + $0x2fc] sm:$0xf]
    %v370 = vld [vmem:[%s1 + $0x300] sm:$0xf]
    %v371 = vld [vmem:[%s1 + $0x304] sm:$0xf]
    %v372 = vld [vmem:[%s1 + $0x308] sm:$0xf]
    %v373 = vld [vmem:[%s1 + $0x30c] sm:$0xf]
    %v374 = vld [vmem:[%s1 + $0x310] sm:$0xf]
    %v375 = vld [vmem:[%s1 + $0x314] sm:$0xf]
    %v376 = vld [vmem:[%s1 + $0x318] sm:$0xf]
    %v377 = vld [vmem:[%s1 + $0x31c] sm:$0xf]
    %v378 = vld [vmem:[%s1 + $0x320] sm:$0xf]
    %v379 = vld [vmem:[%s1 + $0x324] sm:$0xf]
    %v380 = vld [vmem:[%s1 + $0x328] sm:$0xf]
    %v381 = vld [vmem:[%s1 + $0x32c] sm:$0xf]
    %v382 = vld [vmem:[%s1 + $0x330] sm:$0xf]
    %v383 = vld [vmem:[%s1 + $0x334] sm:$0xf]
    %v384 = vld [vmem:[%s1 + $0x338] sm:$0xf]
    %v385 = vld [vmem:[%s1 + $0x33c] sm:$0xf]
    %v386 = vld [vmem:[%s1 + $0x340] sm:$0xf]
    %v387 = vld [vmem:[%s1 + $0x344] sm:$0xf]
    %v388 = vld [vmem:[%s1 + $0x348] sm:$0xf]
    %v389 = vld [vmem:[%s1 + $0x34c] sm:$0xf]
    %v390 = vld [vmem:[%s1 + $0x350] sm:$0xf]
    %v391 = vld [vmem:[%s1 + $0x354] sm:$0xf]
    %v392 = vld [vmem:[%s1 + $0x358] sm:$0xf]
    %v393 = vld [vmem:[%s1 + $0x35c] sm:$0xf]
    %v394 = vld [vmem:[%s1 + $0x360] sm:$0xf]
    %v395 = vld [vmem:[%s1 + $0x364] sm:$0xf]
    %v396 = vld [vmem:[%s1 + $0x368] sm:$0xf]
    %v397 = vld [vmem:[%s1 + $0x36c] sm:$0xf]
    %v398 = vld [vmem:[%s1 + $0x370] sm:$0xf]
    %v399 = vld [vmem:[%s1 + $0x374] sm:$0xf]
    %v400 = vld [vmem:[%s1 + $0x378] sm:$0xf]
    %v401 = vld [vmem:[%s1 + $0x37c] sm:$0xf]
    %v402 = vld [vmem:[%s1 + $0x380] sm:$0xf]
    %v403 = vld [vmem:[%s1 + $0x384] sm:$0xf]
    %v404 = vld [vmem:[%s1 + $0x388] sm:$0xf]
    %v405 = vld [vmem:[%s1 + $0x38c] sm:$0xf]
    %v406 = vld [vmem:[%s1 + $0x390] sm:$0xf]
    %v407 = vld [vmem:[%s1 + $0x394] sm:$0xf]
    %v408 = vld [vmem:[%s1 + $0x398] sm:$0xf]
    %v409 = vld [vmem:[%s1 + $0x39c] sm:$0xf]
    %v410 = vld [vmem:[%s1 + $0x3a0] sm:$0xf]
    %v411 = vld [vmem:[%s1 + $0x3a4] sm:$0xf]
    %v412 = vld [vmem:[%s1 + $0x3a8] sm:$0xf]
    %v413 = vld [vmem:[%s1 + $0x3ac] sm:$0xf]
    %v414 = vld [vmem:[%s1 + $0x3b0] sm:$0xf]
    %v415 = vld [vmem:[%s1 + $0x3b4] sm:$0xf]
    %v416 = vld [vmem:[%s1 + $0x3b8] sm:$0xf]
    %v417 = vld [vmem:[%s1 + $0x3bc] sm:$0xf]
    %v418 = vld [vmem:[%s1 + $0x3c0] sm:$0xf]
    %v419 = vld [vmem:[%s1 + $0x3c4] sm:$0xf]
    %v420 = vld [vmem:[%s1 + $0x3c8] sm:$0xf]
    %v421 = vld [vmem:[%s1 + $0x3cc] sm:$0xf]
    %v422 = vld [vmem:[%s1 + $0x3d0] sm:$0xf]
    %v423 = vld [vmem:[%s1 + $0x3d4] sm:$0xf]
    %v424 = vld [vmem:[%s1 + $0x3d8] sm:$0xf]
    %v425 = vld [vmem:[%s1 + $0x3dc] sm:$0xf]
    %v426 = vld [vmem:[%s1 + $0x3e0] sm:$0xf]
    %v427 = vld [vmem:[%s1 + $0x3e4] sm:$0xf]
    %v428 = vld [vmem:[%s1 + $0x3e8] sm:$0xf]
    %v429 = vld [vmem:[%s1 + $0x3ec] sm:$0xf]
    %v430 = vld [vmem:[%s1 + $0x3f0] sm:$0xf]
    %v431 = vld [vmem:[%s1 + $0x3f4] sm:$0xf]
    %v432 = vld [vmem:[%s1 + $0x3f8] sm:$0xf]
    %v433 = vld [vmem:[%s1 + $0x3fc] sm:$0xf]
    %v434 = vld [vmem:[%s1 + $0x400] sm:$0xf]
    %v435 = vld [vmem:[%s1 + $0x404] sm:$0xf]
    %v436 = vld [vmem:[%s1 + $0x408] sm:$0xf]
    %v437 = vld [vmem:[%s1 + $0x40c] sm:$0xf]
    %v438 = vld [vmem:[%s1 + $0x410] sm:$0xf]
    %v439 = vld [vmem:[%s1 + $0x414] sm:$0xf]
    %v440 = vld [vmem:[%s1 + $0x418] sm:$0xf]
    %v441 = vld [vmem:[%s1 + $0x41c] sm:$0xf]
    %v442 = vld [vmem:[%s1 + $0x420] sm:$0xf]
    %v443 = vld [vmem:[%s1 + $0x424] sm:$0xf]
    %v444 = vld [vmem:[%s1 + $0x428] sm:$0xf]
    %v445 = vld [vmem:[%s1 + $0x42c] sm:$0xf]
    %v446 = vld [vmem:[%s1 + $0x430] sm:$0xf]
    %v447 = vld [vmem:[%s1 + $0x434] sm:$0xf]
    %v448 = vld [vmem:[%s1 + $0x438] sm:$0xf]
    %v449 = vld [vmem:[%s1 + $0x43c] sm:$0xf]
    %v450 = vld [vmem:[%s1 + $0x440] sm:$0xf]
    %v451 = vld [vmem:[%s1 + $0x444] sm:$0xf]
    %v452 = vld [vmem:[%s1 + $0x448] sm:$0xf]
    %v453 = vld [vmem:[%s1 + $0x44c] sm:$0xf]
    %v454 = vld [vmem:[%s1 + $0x450] sm:$0xf]
    %v455 = vld [vmem:[%s1 + $0x454] sm:$0xf]
    %v456 = vld [vmem:[%s1 + $0x458] sm:$0xf]
    %v457 = vld [vmem:[%s1 + $0x45c] sm:$0xf]
    %v458 = vld [vmem:[%s1 + $0x460] sm:$0xf]
    %v459 = vld [vmem:[%s1 + $0x464] sm:$0xf]
    %v460 = vld [vmem:[%s1 + $0x468] sm:$0xf]
    %v461 = vld [vmem:[%s1 + $0x46c] sm:$0xf]
    %v462 = vld [vmem:[%s1 + $0x470] sm:$0xf]
    %v463 = vld [vmem:[%s1 + $0x474] sm:$0xf]
    %v464 = vld [vmem:[%s1 + $0x478] sm:$0xf]
    %v465 = vld [vmem:[%s1 + $0x47c] sm:$0xf]
    %v466 = vld [vmem:[%s1 + $0x480] sm:$0xf]
    %v467 = vld [vmem:[%s1 + $0x484] sm:$0xf]
    %v468 = vld [vmem:[%s1 + $0x488] sm:$0xf]
    %v469 = vld [vmem:[%s1 + $0x48c] sm:$0xf]
    %v470 = vld [vmem:[%s1 + $0x490] sm:$0xf]
    %v471 = vld [vmem:[%s1 + $0x494] sm:$0xf]
    %v472 = vld [vmem:[%s1 + $0x498] sm:$0xf]
    %v473 = vld [vmem:[%s1 + $0x49c] sm:$0xf]
    %v474 = vld [vmem:[%s1 + $0x4a0] sm:$0xf]
    %v475 = vld [vmem:[%s1 + $0x4a4] sm:$0xf]
    %v476 = vld [vmem:[%s1 + $0x4a8] sm:$0xf]
    %v477 = vld [vmem:[%s1 + $0x4ac] sm:$0xf]
    %v478 = vld [vmem:[%s1 + $0x4b0] sm:$0xf]
    %v479 = vld [vmem:[%s1 + $0x4b4] sm:$0xf]
    %v480 = vld [vmem:[%s1 + $0x4b8] sm:$0xf]
    %v481 = vld [vmem:[%s1 + $0x4bc] sm:$0xf]
    %v482 = vld [vmem:[%s1 + $0x4c0] sm:$0xf]
    %v483 = vld [vmem:[%s1 + $0x4c4] sm:$0xf]
    %v484 = vld [vmem:[%s1 + $0x4c8] sm:$0xf]
    %v485 = vld [vmem:[%s1 + $0x4cc] sm:$0xf]
    %v486 = vld [vmem:[%s1 + $0x4d0] sm:$0xf]
    %v487 = vld [vmem:[%s1 + $0x4d4] sm:$0xf]
    %v488 = vld [vmem:[%s1 + $0x4d8] sm:$0xf]
    %v489 = vld [vmem:[%s1 + $0x4dc] sm:$0xf]
    %v490 = vld [vmem:[%s1 + $0x4e0] sm:$0xf]
    %v491 = vld [vmem:[%s1 + $0x4e4] sm:$0xf]
    %v492 = vld [vmem:[%s1 + $0x4e8] sm:$0xf]
    %v493 = vld [vmem:[%s1 + $0x4ec] sm:$0xf]
    %v494 = vld [vmem:[%s1 + $0x4f0] sm:$0xf]
    %v495 = vld [vmem:[%s1 + $0x4f4] sm:$0xf]
    %v496 = vld [vmem:[%s1 + $0x4f8] sm:$0xf]
    %v497 = vld [vmem:[%s1 + $0x4fc] sm:$0xf]
    %v498 = vld [vmem:[%s1 + $0x500] sm:$0xf]
    %v499 = vld [vmem:[%s1 + $0x504] sm:$0xf]
    %v500 = vld [vmem:[%s1 + $0x508] sm:$0xf]
    %v501 = vld [vmem:[%s1 + $0x50c] sm:$0xf]
    %v502 = vld [vmem:[%s1 + $0x510] sm:$0xf]
    %v503 = vld [vmem:[%s1 + $0x514] sm:$0xf]
    %v504 = vld [vmem:[%s1 + $0x518] sm:$0xf]
    %v505 = vld [vmem:[%s1 + $0x51c] sm:$0xf]
    %v506 = vld [vmem:[%s1 + $0x520] sm:$0xf]
    %v507 = vld [vmem:[%s1 + $0x524] sm:$0xf]
    %v508 = vld [vmem:[%s1 + $0x528] sm:$0xf]
    %v509 = vld [vmem:[%s1 + $0x52c] sm:$0xf]
    %v510 = vld [vmem:[%s1 + $0x530] sm:$0xf]
    %v511 = vld [vmem:[%s1 + $0x534] sm:$0xf]
    %v512 = vld [vmem:[%s1 + $0x538] sm:$0xf]
    %v513 = vld [vmem:[%s1 + $0x53c] sm:$0xf]
    %v514 = vld [vmem:[%s1 + $0x540] sm:$0xf]
    %v515 = vld [vmem:[%s1 + $0x544] sm:$0xf]
    %v516 = vld [vmem:[%s1 + $0x548] sm:$0xf]
    %v517 = vld [vmem:[%s1 + $0x54c] sm:$0xf]
    %v518 = vld [vmem:[%s1 + $0x550] sm:$0xf]
    %v519 = vld [vmem:[%s1 + $0x554] sm:$0xf]
    %v520 = vld [vmem:[%s1 + $0x558] sm:$0xf]
    %v521 = vld [vmem:[%s1 + $0x55c] sm:$0xf]
    %v522 = vld [vmem:[%s1 + $0x560] sm:$0xf]
    %v523 = vld [vmem:[%s1 + $0x564] sm:$0xf]
    %v524 = vld [vmem:[%s1 + $0x568] sm:$0xf]
    %v525 = vld [vmem:[%s1 + $0x56c] sm:$0xf]
    %v526 = vld [vmem:[%s1 + $0x570] sm:$0xf]
    %v527 = vld [vmem:[%s1 + $0x574] sm:$0xf]
    %v528 = vld [vmem:[%s1 + $0x578] sm:$0xf]
    %v529 = vld [vmem:[%s1 + $0x57c] sm:$0xf]
    %v530 = vld [vmem:[%s1 + $0x580] sm:$0xf]
    %v531 = vld [vmem:[%s1 + $0x584] sm:$0xf]
    %v532 = vld [vmem:[%s1 + $0x588] sm:$0xf]
    %v533 = vld [vmem:[%s1 + $0x58c] sm:$0xf]
    %v534 = vld [vmem:[%s1 + $0x590] sm:$0xf]
    %v535 = vld [vmem:[%s1 + $0x594] sm:$0xf]
    %v536 = vld [vmem:[%s1 + $0x598] sm:$0xf]
    %v537 = vld [vmem:[%s1 + $0x59c] sm:$0xf]
    %v538 = vld [vmem:[%s1 + $0x5a0] sm:$0xf]
    %v539 = vld [vmem:[%s1 + $0x5a4] sm:$0xf]
    %v540 = vld [vmem:[%s1 + $0x5a8] sm:$0xf]
    %v541 = vld [vmem:[%s1 + $0x5ac] sm:$0xf]
    %v542 = vld [vmem:[%s1 + $0x5b0] sm:$0xf]
    %v543 = vld [vmem:[%s1 + $0x5b4] sm:$0xf]
    %v544 = vld [vmem:[%s1 + $0x5b8] sm:$0xf]
    %v545 = vld [vmem:[%s1 + $0x5bc] sm:$0xf]
    %v546 = vld [vmem:[%s1 + $0x5c0] sm:$0xf]
    %v547 = vld [vmem:[%s1 + $0x5c4] sm:$0xf]
    %v548 = vld [vmem:[%s1 + $0x5c8] sm:$0xf]
    %v549 = vld [vmem:[%s1 + $0x5cc] sm:$0xf]
    %v550 = vld [vmem:[%s1 + $0x5d0] sm:$0xf]
    %v551 = vld [vmem:[%s1 + $0x5d4] sm:$0xf]
    %v552 = vld [vmem:[%s1 + $0x5d8] sm:$0xf]
    %v553 = vld [vmem:[%s1 + $0x5dc] sm:$0xf]
    %v554 = vld [vmem:[%s1 + $0x5e0] sm:$0xf]
    %v555 = vld [vmem:[%s1 + $0x5e4] sm:$0xf]
    %v556 = vld [vmem:[%s1 + $0x5e8] sm:$0xf]
    %v557 = vld [vmem:[%s1 + $0x5ec] sm:$0xf]
    %v558 = vld [vmem:[%s1 + $0x5f0] sm:$0xf]
    %v559 = vld [vmem:[%s1 + $0x5f4] sm:$0xf]
    %v560 = vld [vmem:[%s1 + $0x5f8] sm:$0xf]
    %v561 = vld [vmem:[%s1 + $0x5fc] sm:$0xf]
    %v562 = vld [vmem:[%s2] sm:$0x1]
    %v564 = vperm.slane %v562, 0
    %v950 = vunpack.c.l.b16 %v178
    %v951 = vunpack.c.l.b16 %v179
    %v952 = vunpack.c.l.b16 %v180
    %v953 = vunpack.c.l.b16 %v181
    %v954 = vunpack.c.l.b16 %v182
    %v955 = vunpack.c.l.b16 %v183
    %v956 = vunpack.c.l.b16 %v184
    %v957 = vunpack.c.l.b16 %v185
    %v958 = vunpack.c.l.b16 %v186
    %v959 = vunpack.c.l.b16 %v187
    %v960 = vunpack.c.l.b16 %v188
    %v961 = vunpack.c.l.b16 %v189
    %v962 = vunpack.c.l.b16 %v190
    %v963 = vunpack.c.l.b16 %v191
    %v964 = vunpack.c.l.b16 %v192
    %v965 = vunpack.c.l.b16 %v193
    %v966 = vunpack.c.l.b16 %v194
    %v967 = vunpack.c.l.b16 %v195
    %v968 = vunpack.c.l.b16 %v196
    %v969 = vunpack.c.l.b16 %v197
    %v970 = vunpack.c.l.b16 %v198
    %v971 = vunpack.c.l.b16 %v199
    %v972 = vunpack.c.l.b16 %v200
    %v973 = vunpack.c.l.b16 %v201
    %v974 = vunpack.c.l.b16 %v202
    %v975 = vunpack.c.l.b16 %v203
    %v976 = vunpack.c.l.b16 %v204
    %v977 = vunpack.c.l.b16 %v205
    %v978 = vunpack.c.l.b16 %v206
    %v979 = vunpack.c.l.b16 %v207
    %v980 = vunpack.c.l.b16 %v208
    %v981 = vunpack.c.l.b16 %v209
    %v982 = vunpack.c.l.b16 %v210
    %v983 = vunpack.c.l.b16 %v211
    %v984 = vunpack.c.l.b16 %v212
    %v985 = vunpack.c.l.b16 %v213
    %v986 = vunpack.c.l.b16 %v214
    %v987 = vunpack.c.l.b16 %v215
    %v988 = vunpack.c.l.b16 %v216
    %v989 = vunpack.c.l.b16 %v217
    %v990 = vunpack.c.l.b16 %v218
    %v991 = vunpack.c.l.b16 %v219
    %v992 = vunpack.c.l.b16 %v220
    %v993 = vunpack.c.l.b16 %v221
    %v994 = vunpack.c.l.b16 %v222
    %v995 = vunpack.c.l.b16 %v223
    %v996 = vunpack.c.l.b16 %v224
    %v997 = vunpack.c.l.b16 %v225
    %v998 = vunpack.c.l.b16 %v226
    %v999 = vunpack.c.l.b16 %v227
    %v1000 = vunpack.c.l.b16 %v228
    %v1001 = vunpack.c.l.b16 %v229
    %v1002 = vunpack.c.l.b16 %v230
    %v1003 = vunpack.c.l.b16 %v231
    %v1004 = vunpack.c.l.b16 %v232
    %v1005 = vunpack.c.l.b16 %v233
    %v1006 = vunpack.c.l.b16 %v234
    %v1007 = vunpack.c.l.b16 %v235
    %v1008 = vunpack.c.l.b16 %v236
    %v1009 = vunpack.c.l.b16 %v237
    %v1010 = vunpack.c.l.b16 %v238
    %v1011 = vunpack.c.l.b16 %v239
    %v1012 = vunpack.c.l.b16 %v240
    %v1013 = vunpack.c.l.b16 %v241
    %v1014 = vunpack.c.l.b16 %v242
    %v1015 = vunpack.c.l.b16 %v243
    %v1016 = vunpack.c.l.b16 %v244
    %v1017 = vunpack.c.l.b16 %v245
    %v1018 = vunpack.c.l.b16 %v246
    %v1019 = vunpack.c.l.b16 %v247
    %v1020 = vunpack.c.l.b16 %v248
    %v1021 = vunpack.c.l.b16 %v249
    %v1022 = vunpack.c.l.b16 %v250
    %v1023 = vunpack.c.l.b16 %v251
    %v1024 = vunpack.c.l.b16 %v252
    %v1025 = vunpack.c.l.b16 %v253
    %v1026 = vunpack.c.l.b16 %v254
    %v1027 = vunpack.c.l.b16 %v255
    %v1028 = vunpack.c.l.b16 %v256
    %v1029 = vunpack.c.l.b16 %v257
    %v1030 = vunpack.c.l.b16 %v258
    %v1031 = vunpack.c.l.b16 %v259
    %v1032 = vunpack.c.l.b16 %v260
    %v1033 = vunpack.c.l.b16 %v261
    %v1034 = vunpack.c.l.b16 %v262
    %v1035 = vunpack.c.l.b16 %v263
    %v1036 = vunpack.c.l.b16 %v264
    %v1037 = vunpack.c.l.b16 %v265
    %v1038 = vunpack.c.l.b16 %v266
    %v1039 = vunpack.c.l.b16 %v267
    %v1040 = vunpack.c.l.b16 %v268
    %v1041 = vunpack.c.l.b16 %v269
    %v1042 = vunpack.c.l.b16 %v270
    %v1043 = vunpack.c.l.b16 %v271
    %v1044 = vunpack.c.l.b16 %v272
    %v1045 = vunpack.c.l.b16 %v273
    %v1046 = vunpack.c.l.b16 %v274
    %v1047 = vunpack.c.l.b16 %v275
    %v1048 = vunpack.c.l.b16 %v276
    %v1049 = vunpack.c.l.b16 %v277
    %v1050 = vunpack.c.l.b16 %v278
    %v1051 = vunpack.c.l.b16 %v279
    %v1052 = vunpack.c.l.b16 %v280
    %v1053 = vunpack.c.l.b16 %v281
    %v1054 = vunpack.c.l.b16 %v282
    %v1055 = vunpack.c.l.b16 %v283
    %v1056 = vunpack.c.l.b16 %v284
    %v1057 = vunpack.c.l.b16 %v285
    %v1058 = vunpack.c.l.b16 %v286
    %v1059 = vunpack.c.l.b16 %v287
    %v1060 = vunpack.c.l.b16 %v288
    %v1061 = vunpack.c.l.b16 %v289
    %v1062 = vunpack.c.l.b16 %v290
    %v1063 = vunpack.c.l.b16 %v291
    %v1064 = vunpack.c.l.b16 %v292
    %v1065 = vunpack.c.l.b16 %v293
    %v1066 = vunpack.c.l.b16 %v294
    %v1067 = vunpack.c.l.b16 %v295
    %v1068 = vunpack.c.l.b16 %v296
    %v1069 = vunpack.c.l.b16 %v297
    %v1070 = vunpack.c.l.b16 %v298
    %v1071 = vunpack.c.l.b16 %v299
    %v1072 = vunpack.c.l.b16 %v300
    %v1073 = vunpack.c.l.b16 %v301
    %v1074 = vunpack.c.l.b16 %v302
    %v1075 = vunpack.c.l.b16 %v303
    %v1076 = vunpack.c.l.b16 %v304
    %v1077 = vunpack.c.l.b16 %v305
    %v1078 = vunpack.c.l.b16 %v306
    %v1079 = vunpack.c.l.b16 %v307
    %v1080 = vunpack.c.l.b16 %v308
    %v1081 = vunpack.c.l.b16 %v309
    %v1082 = vunpack.c.l.b16 %v310
    %v1083 = vunpack.c.l.b16 %v311
    %v1084 = vunpack.c.l.b16 %v312
    %v1085 = vunpack.c.l.b16 %v313
    %v1086 = vunpack.c.l.b16 %v314
    %v1087 = vunpack.c.l.b16 %v315
    %v1088 = vunpack.c.l.b16 %v316
    %v1089 = vunpack.c.l.b16 %v317
    %v1090 = vunpack.c.l.b16 %v318
    %v1091 = vunpack.c.l.b16 %v319
    %v1092 = vunpack.c.l.b16 %v320
    %v1093 = vunpack.c.l.b16 %v321
    %v1094 = vunpack.c.l.b16 %v322
    %v1095 = vunpack.c.l.b16 %v323
    %v1096 = vunpack.c.l.b16 %v324
    %v1097 = vunpack.c.l.b16 %v325
    %v1098 = vunpack.c.l.b16 %v326
    %v1099 = vunpack.c.l.b16 %v327
    %v1100 = vunpack.c.l.b16 %v328
    %v1101 = vunpack.c.l.b16 %v329
    %v1102 = vunpack.c.l.b16 %v330
    %v1103 = vunpack.c.l.b16 %v331
    %v1104 = vunpack.c.l.b16 %v332
    %v1105 = vunpack.c.l.b16 %v333
    %v1106 = vunpack.c.l.b16 %v334
    %v1107 = vunpack.c.l.b16 %v335
    %v1108 = vunpack.c.l.b16 %v336
    %v1109 = vunpack.c.l.b16 %v337
    %v1110 = vunpack.c.l.b16 %v338
    %v1111 = vunpack.c.l.b16 %v339
    %v1112 = vunpack.c.l.b16 %v340
    %v1113 = vunpack.c.l.b16 %v341
    %v1114 = vunpack.c.l.b16 %v342
    %v1115 = vunpack.c.l.b16 %v343
    %v1116 = vunpack.c.l.b16 %v344
    %v1117 = vunpack.c.l.b16 %v345
    %v1118 = vunpack.c.l.b16 %v346
    %v1119 = vunpack.c.l.b16 %v347
    %v1120 = vunpack.c.l.b16 %v348
    %v1121 = vunpack.c.l.b16 %v349
    %v1122 = vunpack.c.l.b16 %v350
    %v1123 = vunpack.c.l.b16 %v351
    %v1124 = vunpack.c.l.b16 %v352
    %v1125 = vunpack.c.l.b16 %v353
    %v1126 = vunpack.c.l.b16 %v354
    %v1127 = vunpack.c.l.b16 %v355
    %v1128 = vunpack.c.l.b16 %v356
    %v1129 = vunpack.c.l.b16 %v357
    %v1130 = vunpack.c.l.b16 %v358
    %v1131 = vunpack.c.l.b16 %v359
    %v1132 = vunpack.c.l.b16 %v360
    %v1133 = vunpack.c.l.b16 %v361
    %v1134 = vunpack.c.l.b16 %v362
    %v1135 = vunpack.c.l.b16 %v363
    %v1136 = vunpack.c.l.b16 %v364
    %v1137 = vunpack.c.l.b16 %v365
    %v1138 = vunpack.c.l.b16 %v366
    %v1139 = vunpack.c.l.b16 %v367
    %v1140 = vunpack.c.l.b16 %v368
    %v1141 = vunpack.c.l.b16 %v369
    %v1142 = vunpack.c.l.b16 %v370
    %v1143 = vunpack.c.l.b16 %v371
    %v1144 = vunpack.c.l.b16 %v372
    %v1145 = vunpack.c.l.b16 %v373
    %v1146 = vunpack.c.l.b16 %v374
    %v1147 = vunpack.c.l.b16 %v375
    %v1148 = vunpack.c.l.b16 %v376
    %v1149 = vunpack.c.l.b16 %v377
    %v1150 = vunpack.c.l.b16 %v378
    %v1151 = vunpack.c.l.b16 %v379
    %v1152 = vunpack.c.l.b16 %v380
    %v1153 = vunpack.c.l.b16 %v381
    %v1154 = vunpack.c.l.b16 %v382
    %v1155 = vunpack.c.l.b16 %v383
    %v1156 = vunpack.c.l.b16 %v384
    %v1157 = vunpack.c.l.b16 %v385
    %v1158 = vunpack.c.l.b16 %v386
    %v1159 = vunpack.c.l.b16 %v387
    %v1160 = vunpack.c.l.b16 %v388
    %v1161 = vunpack.c.l.b16 %v389
    %v1162 = vunpack.c.l.b16 %v390
    %v1163 = vunpack.c.l.b16 %v391
    %v1164 = vunpack.c.l.b16 %v392
    %v1165 = vunpack.c.l.b16 %v393
    %v1166 = vunpack.c.l.b16 %v394
    %v1167 = vunpack.c.l.b16 %v395
    %v1168 = vunpack.c.l.b16 %v396
    %v1169 = vunpack.c.l.b16 %v397
    %v1170 = vunpack.c.l.b16 %v398
    %v1171 = vunpack.c.l.b16 %v399
    %v1172 = vunpack.c.l.b16 %v400
    %v1173 = vunpack.c.l.b16 %v401
    %v1174 = vunpack.c.l.b16 %v402
    %v1175 = vunpack.c.l.b16 %v403
    %v1176 = vunpack.c.l.b16 %v404
    %v1177 = vunpack.c.l.b16 %v405
    %v1178 = vunpack.c.l.b16 %v406
    %v1179 = vunpack.c.l.b16 %v407
    %v1180 = vunpack.c.l.b16 %v408
    %v1181 = vunpack.c.l.b16 %v409
    %v1182 = vunpack.c.l.b16 %v410
    %v1183 = vunpack.c.l.b16 %v411
    %v1184 = vunpack.c.l.b16 %v412
    %v1185 = vunpack.c.l.b16 %v413
    %v1186 = vunpack.c.l.b16 %v414
    %v1187 = vunpack.c.l.b16 %v415
    %v1188 = vunpack.c.l.b16 %v416
    %v1189 = vunpack.c.l.b16 %v417
    %v1190 = vunpack.c.l.b16 %v418
    %v1191 = vunpack.c.l.b16 %v419
    %v1192 = vunpack.c.l.b16 %v420
    %v1193 = vunpack.c.l.b16 %v421
    %v1194 = vunpack.c.l.b16 %v422
    %v1195 = vunpack.c.l.b16 %v423
    %v1196 = vunpack.c.l.b16 %v424
    %v1197 = vunpack.c.l.b16 %v425
    %v1198 = vunpack.c.l.b16 %v426
    %v1199 = vunpack.c.l.b16 %v427
    %v1200 = vunpack.c.l.b16 %v428
    %v1201 = vunpack.c.l.b16 %v429
    %v1202 = vunpack.c.l.b16 %v430
    %v1203 = vunpack.c.l.b16 %v431
    %v1204 = vunpack.c.l.b16 %v432
    %v1205 = vunpack.c.l.b16 %v433
    %v1206 = vunpack.c.l.b16 %v434
    %v1207 = vunpack.c.l.b16 %v435
    %v1208 = vunpack.c.l.b16 %v436
    %v1209 = vunpack.c.l.b16 %v437
    %v1210 = vunpack.c.l.b16 %v438
    %v1211 = vunpack.c.l.b16 %v439
    %v1212 = vunpack.c.l.b16 %v440
    %v1213 = vunpack.c.l.b16 %v441
    %v1214 = vunpack.c.l.b16 %v442
    %v1215 = vunpack.c.l.b16 %v443
    %v1216 = vunpack.c.l.b16 %v444
    %v1217 = vunpack.c.l.b16 %v445
    %v1218 = vunpack.c.l.b16 %v446
    %v1219 = vunpack.c.l.b16 %v447
    %v1220 = vunpack.c.l.b16 %v448
    %v1221 = vunpack.c.l.b16 %v449
    %v1222 = vunpack.c.l.b16 %v450
    %v1223 = vunpack.c.l.b16 %v451
    %v1224 = vunpack.c.l.b16 %v452
    %v1225 = vunpack.c.l.b16 %v453
    %v1226 = vunpack.c.l.b16 %v454
    %v1227 = vunpack.c.l.b16 %v455
    %v1228 = vunpack.c.l.b16 %v456
    %v1229 = vunpack.c.l.b16 %v457
    %v1230 = vunpack.c.l.b16 %v458
    %v1231 = vunpack.c.l.b16 %v459
    %v1232 = vunpack.c.l.b16 %v460
    %v1233 = vunpack.c.l.b16 %v461
    %v1234 = vunpack.c.l.b16 %v462
    %v1235 = vunpack.c.l.b16 %v463
    %v1236 = vunpack.c.l.b16 %v464
    %v1237 = vunpack.c.l.b16 %v465
    %v1238 = vunpack.c.l.b16 %v466
    %v1239 = vunpack.c.l.b16 %v467
    %v1240 = vunpack.c.l.b16 %v468
    %v1241 = vunpack.c.l.b16 %v469
    %v1242 = vunpack.c.l.b16 %v470
    %v1243 = vunpack.c.l.b16 %v471
    %v1244 = vunpack.c.l.b16 %v472
    %v1245 = vunpack.c.l.b16 %v473
    %v1246 = vunpack.c.l.b16 %v474
    %v1247 = vunpack.c.l.b16 %v475
    %v1248 = vunpack.c.l.b16 %v476
    %v1249 = vunpack.c.l.b16 %v477
    %v1250 = vunpack.c.l.b16 %v478
    %v1251 = vunpack.c.l.b16 %v479
    %v1252 = vunpack.c.l.b16 %v480
    %v1253 = vunpack.c.l.b16 %v481
    %v1254 = vunpack.c.l.b16 %v482
    %v1255 = vunpack.c.l.b16 %v483
    %v1256 = vunpack.c.l.b16 %v484
    %v1257 = vunpack.c.l.b16 %v485
    %v1258 = vunpack.c.l.b16 %v486
    %v1259 = vunpack.c.l.b16 %v487
    %v1260 = vunpack.c.l.b16 %v488
    %v1261 = vunpack.c.l.b16 %v489
    %v1262 = vunpack.c.l.b16 %v490
    %v1263 = vunpack.c.l.b16 %v491
    %v1264 = vunpack.c.l.b16 %v492
    %v1265 = vunpack.c.l.b16 %v493
    %v1266 = vunpack.c.l.b16 %v494
    %v1267 = vunpack.c.l.b16 %v495
    %v1268 = vunpack.c.l.b16 %v496
    %v1269 = vunpack.c.l.b16 %v497
    %v1270 = vunpack.c.l.b16 %v498
    %v1271 = vunpack.c.l.b16 %v499
    %v1272 = vunpack.c.l.b16 %v500
    %v1273 = vunpack.c.l.b16 %v501
    %v1274 = vunpack.c.l.b16 %v502
    %v1275 = vunpack.c.l.b16 %v503
    %v1276 = vunpack.c.l.b16 %v504
    %v1277 = vunpack.c.l.b16 %v505
    %v1278 = vunpack.c.l.b16 %v506
    %v1279 = vunpack.c.l.b16 %v507
    %v1280 = vunpack.c.l.b16 %v508
    %v1281 = vunpack.c.l.b16 %v509
    %v1282 = vunpack.c.l.b16 %v510
    %v1283 = vunpack.c.l.b16 %v511
    %v1284 = vunpack.c.l.b16 %v512
    %v1285 = vunpack.c.l.b16 %v513
    %v1286 = vunpack.c.l.b16 %v514
    %v1287 = vunpack.c.l.b16 %v515
    %v1288 = vunpack.c.l.b16 %v516
    %v1289 = vunpack.c.l.b16 %v517
    %v1290 = vunpack.c.l.b16 %v518
    %v1291 = vunpack.c.l.b16 %v519
    %v1292 = vunpack.c.l.b16 %v520
    %v1293 = vunpack.c.l.b16 %v521
    %v1294 = vunpack.c.l.b16 %v522
    %v1295 = vunpack.c.l.b16 %v523
    %v1296 = vunpack.c.l.b16 %v524
    %v1297 = vunpack.c.l.b16 %v525
    %v1298 = vunpack.c.l.b16 %v526
    %v1299 = vunpack.c.l.b16 %v527
    %v1300 = vunpack.c.l.b16 %v528
    %v1301 = vunpack.c.l.b16 %v529
    %v1302 = vunpack.c.l.b16 %v530
    %v1303 = vunpack.c.l.b16 %v531
    %v1304 = vunpack.c.l.b16 %v532
    %v1305 = vunpack.c.l.b16 %v533
    %v1306 = vunpack.c.l.b16 %v534
    %v1307 = vunpack.c.l.b16 %v535
    %v1308 = vunpack.c.l.b16 %v536
    %v1309 = vunpack.c.l.b16 %v537
    %v1310 = vunpack.c.l.b16 %v538
    %v1311 = vunpack.c.l.b16 %v539
    %v1312 = vunpack.c.l.b16 %v540
    %v1313 = vunpack.c.l.b16 %v541
    %v1314 = vunpack.c.l.b16 %v542
    %v1315 = vunpack.c.l.b16 %v543
    %v1316 = vunpack.c.l.b16 %v544
    %v1317 = vunpack.c.l.b16 %v545
    %v1318 = vunpack.c.l.b16 %v546
    %v1319 = vunpack.c.l.b16 %v547
    %v1320 = vunpack.c.l.b16 %v548
    %v1321 = vunpack.c.l.b16 %v549
    %v1322 = vunpack.c.l.b16 %v550
    %v1323 = vunpack.c.l.b16 %v551
    %v1324 = vunpack.c.l.b16 %v552
    %v1325 = vunpack.c.l.b16 %v553
    %v1326 = vunpack.c.l.b16 %v554
    %v1327 = vunpack.c.l.b16 %v555
    %v1328 = vunpack.c.l.b16 %v556
    %v1329 = vunpack.c.l.b16 %v557
    %v1330 = vunpack.c.l.b16 %v558
    %v1331 = vunpack.c.l.b16 %v559
    %v1332 = vunpack.c.l.b16 %v560
    %v1333 = vunpack.c.l.b16 %v561
    %v1334 = vpack.c.b16 %v951, %v950
    %v1335 = vpack.c.b16 %v953, %v952
    %v1336 = vpack.c.b16 %v955, %v954
    %v1337 = vpack.c.b16 %v957, %v956
    %v1338 = vpack.c.b16 %v959, %v958
    %v1339 = vpack.c.b16 %v961, %v960
    %v1340 = vpack.c.b16 %v963, %v962
    %v1341 = vpack.c.b16 %v965, %v964
    %v1342 = vpack.c.b16 %v967, %v966
    %v1343 = vpack.c.b16 %v969, %v968
    %v1344 = vpack.c.b16 %v971, %v970
    %v1345 = vpack.c.b16 %v973, %v972
    %v1346 = vpack.c.b16 %v975, %v974
    %v1347 = vpack.c.b16 %v977, %v976
    %v1348 = vpack.c.b16 %v979, %v978
    %v1349 = vpack.c.b16 %v981, %v980
    %v1350 = vpack.c.b16 %v983, %v982
    %v1351 = vpack.c.b16 %v985, %v984
    %v1352 = vpack.c.b16 %v987, %v986
    %v1353 = vpack.c.b16 %v989, %v988
    %v1354 = vpack.c.b16 %v991, %v990
    %v1355 = vpack.c.b16 %v993, %v992
    %v1356 = vpack.c.b16 %v995, %v994
    %v1357 = vpack.c.b16 %v997, %v996
    %v1358 = vpack.c.b16 %v999, %v998
    %v1359 = vpack.c.b16 %v1001, %v1000
    %v1360 = vpack.c.b16 %v1003, %v1002
    %v1361 = vpack.c.b16 %v1005, %v1004
    %v1362 = vpack.c.b16 %v1007, %v1006
    %v1363 = vpack.c.b16 %v1009, %v1008
    %v1364 = vpack.c.b16 %v1011, %v1010
    %v1365 = vpack.c.b16 %v1013, %v1012
    %v1366 = vpack.c.b16 %v1015, %v1014
    %v1367 = vpack.c.b16 %v1017, %v1016
    %v1368 = vpack.c.b16 %v1019, %v1018
    %v1369 = vpack.c.b16 %v1021, %v1020
    %v1370 = vpack.c.b16 %v1023, %v1022
    %v1371 = vpack.c.b16 %v1025, %v1024
    %v1372 = vpack.c.b16 %v1027, %v1026
    %v1373 = vpack.c.b16 %v1029, %v1028
    %v1374 = vpack.c.b16 %v1031, %v1030
    %v1375 = vpack.c.b16 %v1033, %v1032
    %v1376 = vpack.c.b16 %v1035, %v1034
    %v1377 = vpack.c.b16 %v1037, %v1036
    %v1378 = vpack.c.b16 %v1039, %v1038
    %v1379 = vpack.c.b16 %v1041, %v1040
    %v1380 = vpack.c.b16 %v1043, %v1042
    %v1381 = vpack.c.b16 %v1045, %v1044
    %v1382 = vpack.c.b16 %v1047, %v1046
    %v1383 = vpack.c.b16 %v1049, %v1048
    %v1384 = vpack.c.b16 %v1051, %v1050
    %v1385 = vpack.c.b16 %v1053, %v1052
    %v1386 = vpack.c.b16 %v1055, %v1054
    %v1387 = vpack.c.b16 %v1057, %v1056
    %v1388 = vpack.c.b16 %v1059, %v1058
    %v1389 = vpack.c.b16 %v1061, %v1060
    %v1390 = vpack.c.b16 %v1063, %v1062
    %v1391 = vpack.c.b16 %v1065, %v1064
    %v1392 = vpack.c.b16 %v1067, %v1066
    %v1393 = vpack.c.b16 %v1069, %v1068
    %v1394 = vpack.c.b16 %v1071, %v1070
    %v1395 = vpack.c.b16 %v1073, %v1072
    %v1396 = vpack.c.b16 %v1075, %v1074
    %v1397 = vpack.c.b16 %v1077, %v1076
    %v1398 = vpack.c.b16 %v1079, %v1078
    %v1399 = vpack.c.b16 %v1081, %v1080
    %v1400 = vpack.c.b16 %v1083, %v1082
    %v1401 = vpack.c.b16 %v1085, %v1084
    %v1402 = vpack.c.b16 %v1087, %v1086
    %v1403 = vpack.c.b16 %v1089, %v1088
    %v1404 = vpack.c.b16 %v1091, %v1090
    %v1405 = vpack.c.b16 %v1093, %v1092
    %v1406 = vpack.c.b16 %v1095, %v1094
    %v1407 = vpack.c.b16 %v1097, %v1096
    %v1408 = vpack.c.b16 %v1099, %v1098
    %v1409 = vpack.c.b16 %v1101, %v1100
    %v1410 = vpack.c.b16 %v1103, %v1102
    %v1411 = vpack.c.b16 %v1105, %v1104
    %v1412 = vpack.c.b16 %v1107, %v1106
    %v1413 = vpack.c.b16 %v1109, %v1108
    %v1414 = vpack.c.b16 %v1111, %v1110
    %v1415 = vpack.c.b16 %v1113, %v1112
    %v1416 = vpack.c.b16 %v1115, %v1114
    %v1417 = vpack.c.b16 %v1117, %v1116
    %v1418 = vpack.c.b16 %v1119, %v1118
    %v1419 = vpack.c.b16 %v1121, %v1120
    %v1420 = vpack.c.b16 %v1123, %v1122
    %v1421 = vpack.c.b16 %v1125, %v1124
    %v1422 = vpack.c.b16 %v1127, %v1126
    %v1423 = vpack.c.b16 %v1129, %v1128
    %v1424 = vpack.c.b16 %v1131, %v1130
    %v1425 = vpack.c.b16 %v1133, %v1132
    %v1426 = vpack.c.b16 %v1135, %v1134
    %v1427 = vpack.c.b16 %v1137, %v1136
    %v1428 = vpack.c.b16 %v1139, %v1138
    %v1429 = vpack.c.b16 %v1141, %v1140
    %v1430 = vpack.c.b16 %v1143, %v1142
    %v1431 = vpack.c.b16 %v1145, %v1144
    %v1432 = vpack.c.b16 %v1147, %v1146
    %v1433 = vpack.c.b16 %v1149, %v1148
    %v1434 = vpack.c.b16 %v1151, %v1150
    %v1435 = vpack.c.b16 %v1153, %v1152
    %v1436 = vpack.c.b16 %v1155, %v1154
    %v1437 = vpack.c.b16 %v1157, %v1156
    %v1438 = vpack.c.b16 %v1159, %v1158
    %v1439 = vpack.c.b16 %v1161, %v1160
    %v1440 = vpack.c.b16 %v1163, %v1162
    %v1441 = vpack.c.b16 %v1165, %v1164
    %v1442 = vpack.c.b16 %v1167, %v1166
    %v1443 = vpack.c.b16 %v1169, %v1168
    %v1444 = vpack.c.b16 %v1171, %v1170
    %v1445 = vpack.c.b16 %v1173, %v1172
    %v1446 = vpack.c.b16 %v1175, %v1174
    %v1447 = vpack.c.b16 %v1177, %v1176
    %v1448 = vpack.c.b16 %v1179, %v1178
    %v1449 = vpack.c.b16 %v1181, %v1180
    %v1450 = vpack.c.b16 %v1183, %v1182
    %v1451 = vpack.c.b16 %v1185, %v1184
    %v1452 = vpack.c.b16 %v1187, %v1186
    %v1453 = vpack.c.b16 %v1189, %v1188
    %v1454 = vpack.c.b16 %v1191, %v1190
    %v1455 = vpack.c.b16 %v1193, %v1192
    %v1456 = vpack.c.b16 %v1195, %v1194
    %v1457 = vpack.c.b16 %v1197, %v1196
    %v1458 = vpack.c.b16 %v1199, %v1198
    %v1459 = vpack.c.b16 %v1201, %v1200
    %v1460 = vpack.c.b16 %v1203, %v1202
    %v1461 = vpack.c.b16 %v1205, %v1204
    %v1462 = vpack.c.b16 %v1207, %v1206
    %v1463 = vpack.c.b16 %v1209, %v1208
    %v1464 = vpack.c.b16 %v1211, %v1210
    %v1465 = vpack.c.b16 %v1213, %v1212
    %v1466 = vpack.c.b16 %v1215, %v1214
    %v1467 = vpack.c.b16 %v1217, %v1216
    %v1468 = vpack.c.b16 %v1219, %v1218
    %v1469 = vpack.c.b16 %v1221, %v1220
    %v1470 = vpack.c.b16 %v1223, %v1222
    %v1471 = vpack.c.b16 %v1225, %v1224
    %v1472 = vpack.c.b16 %v1227, %v1226
    %v1473 = vpack.c.b16 %v1229, %v1228
    %v1474 = vpack.c.b16 %v1231, %v1230
    %v1475 = vpack.c.b16 %v1233, %v1232
    %v1476 = vpack.c.b16 %v1235, %v1234
    %v1477 = vpack.c.b16 %v1237, %v1236
    %v1478 = vpack.c.b16 %v1239, %v1238
    %v1479 = vpack.c.b16 %v1241, %v1240
    %v1480 = vpack.c.b16 %v1243, %v1242
    %v1481 = vpack.c.b16 %v1245, %v1244
    %v1482 = vpack.c.b16 %v1247, %v1246
    %v1483 = vpack.c.b16 %v1249, %v1248
    %v1484 = vpack.c.b16 %v1251, %v1250
    %v1485 = vpack.c.b16 %v1253, %v1252
    %v1486 = vpack.c.b16 %v1255, %v1254
    %v1487 = vpack.c.b16 %v1257, %v1256
    %v1488 = vpack.c.b16 %v1259, %v1258
    %v1489 = vpack.c.b16 %v1261, %v1260
    %v1490 = vpack.c.b16 %v1263, %v1262
    %v1491 = vpack.c.b16 %v1265, %v1264
    %v1492 = vpack.c.b16 %v1267, %v1266
    %v1493 = vpack.c.b16 %v1269, %v1268
    %v1494 = vpack.c.b16 %v1271, %v1270
    %v1495 = vpack.c.b16 %v1273, %v1272
    %v1496 = vpack.c.b16 %v1275, %v1274
    %v1497 = vpack.c.b16 %v1277, %v1276
    %v1498 = vpack.c.b16 %v1279, %v1278
    %v1499 = vpack.c.b16 %v1281, %v1280
    %v1500 = vpack.c.b16 %v1283, %v1282
    %v1501 = vpack.c.b16 %v1285, %v1284
    %v1502 = vpack.c.b16 %v1287, %v1286
    %v1503 = vpack.c.b16 %v1289, %v1288
    %v1504 = vpack.c.b16 %v1291, %v1290
    %v1505 = vpack.c.b16 %v1293, %v1292
    %v1506 = vpack.c.b16 %v1295, %v1294
    %v1507 = vpack.c.b16 %v1297, %v1296
    %v1508 = vpack.c.b16 %v1299, %v1298
    %v1509 = vpack.c.b16 %v1301, %v1300
    %v1510 = vpack.c.b16 %v1303, %v1302
    %v1511 = vpack.c.b16 %v1305, %v1304
    %v1512 = vpack.c.b16 %v1307, %v1306
    %v1513 = vpack.c.b16 %v1309, %v1308
    %v1514 = vpack.c.b16 %v1311, %v1310
    %v1515 = vpack.c.b16 %v1313, %v1312
    %v1516 = vpack.c.b16 %v1315, %v1314
    %v1517 = vpack.c.b16 %v1317, %v1316
    %v1518 = vpack.c.b16 %v1319, %v1318
    %v1519 = vpack.c.b16 %v1321, %v1320
    %v1520 = vpack.c.b16 %v1323, %v1322
    %v1521 = vpack.c.b16 %v1325, %v1324
    %v1522 = vpack.c.b16 %v1327, %v1326
    %v1523 = vpack.c.b16 %v1329, %v1328
    %v1524 = vpack.c.b16 %v1331, %v1330
    %v1525 = vpack.c.b16 %v1333, %v1332
    %1718 = vmatpush.bf16.msra.mxu0 %v1341
    %1719 = vmatpush.bf16.msra.mxu0 %v1340
    %1720 = vmatpush.bf16.msra.mxu0 %v1339
    %1721 = vmatpush.bf16.msra.mxu0 %v1338
    %1722 = vmatpush.bf16.msra.mxu0 %v1337
    %1723 = vmatpush.bf16.msra.mxu0 %v1336
    %1724 = vmatpush.bf16.msra.mxu0 %v1335
    %1725 = vmatpush.bf16.msra.mxu0 %v1334
    %1726 = vmatmul.bf16.gmra.mxu0 %v154
    %v1727 = vpop.f32.mrf.mxu0
    %v1728 = vadd.f32 %v564, %v1727
    %v1729 = vpop.f32.mrf.mxu0
    %1730 = vdwg.mxu0
    %1731 = vmatpush.bf16.msra.mxu0 %v1349
    %1732 = vmatpush.bf16.msra.mxu0 %v1348
    %1733 = vmatpush.bf16.msra.mxu0 %v1347
    %1734 = vmatpush.bf16.msra.mxu0 %v1346
    %1735 = vmatpush.bf16.msra.mxu0 %v1345
    %1736 = vmatpush.bf16.msra.mxu0 %v1344
    %1737 = vmatpush.bf16.msra.mxu0 %v1343
    %1738 = vmatpush.bf16.msra.mxu0 %v1342
    %1739 = vmatmul.bf16.gmra.mxu0 %v155
    %v1740 = vpop.f32.mrf.mxu0
    %v1741 = vadd.f32 %v1728, %v1740
    %v1742 = vpop.f32.mrf.mxu0
    %1743 = vdwg.mxu0
    %1744 = vmatpush.bf16.msra.mxu0 %v1357
    %1745 = vmatpush.bf16.msra.mxu0 %v1356
    %1746 = vmatpush.bf16.msra.mxu0 %v1355
    %1747 = vmatpush.bf16.msra.mxu0 %v1354
    %1748 = vmatpush.bf16.msra.mxu0 %v1353
    %1749 = vmatpush.bf16.msra.mxu0 %v1352
    %1750 = vmatpush.bf16.msra.mxu0 %v1351
    %1751 = vmatpush.bf16.msra.mxu0 %v1350
    %1752 = vmatmul.bf16.gmra.mxu0 %v156
    %v1753 = vpop.f32.mrf.mxu0
    %v1754 = vadd.f32 %v1741, %v1753
    %v1755 = vpop.f32.mrf.mxu0
    %1756 = vdwg.mxu0
    %1757 = vmatpush.bf16.msra.mxu0 %v1365
    %1758 = vmatpush.bf16.msra.mxu0 %v1364
    %1759 = vmatpush.bf16.msra.mxu0 %v1363
    %1760 = vmatpush.bf16.msra.mxu0 %v1362
    %1761 = vmatpush.bf16.msra.mxu0 %v1361
    %1762 = vmatpush.bf16.msra.mxu0 %v1360
    %1763 = vmatpush.bf16.msra.mxu0 %v1359
    %1764 = vmatpush.bf16.msra.mxu0 %v1358
    %1765 = vmatmul.bf16.gmra.mxu0 %v157
    %v1766 = vpop.f32.mrf.mxu0
    %v1767 = vadd.f32 %v1754, %v1766
    %v1768 = vpop.f32.mrf.mxu0
    %1769 = vdwg.mxu0
    %1770 = vmatpush.bf16.msra.mxu0 %v1373
    %1771 = vmatpush.bf16.msra.mxu0 %v1372
    %1772 = vmatpush.bf16.msra.mxu0 %v1371
    %1773 = vmatpush.bf16.msra.mxu0 %v1370
    %1774 = vmatpush.bf16.msra.mxu0 %v1369
    %1775 = vmatpush.bf16.msra.mxu0 %v1368
    %1776 = vmatpush.bf16.msra.mxu0 %v1367
    %1777 = vmatpush.bf16.msra.mxu0 %v1366
    %1778 = vmatmul.bf16.gmra.mxu0 %v158
    %v1779 = vpop.f32.mrf.mxu0
    %v1780 = vadd.f32 %v1767, %v1779
    %v1781 = vpop.f32.mrf.mxu0
    %1782 = vdwg.mxu0
    %1783 = vmatpush.bf16.msra.mxu0 %v1381
    %1784 = vmatpush.bf16.msra.mxu0 %v1380
    %1785 = vmatpush.bf16.msra.mxu0 %v1379
    %1786 = vmatpush.bf16.msra.mxu0 %v1378
    %1787 = vmatpush.bf16.msra.mxu0 %v1377
    %1788 = vmatpush.bf16.msra.mxu0 %v1376
    %1789 = vmatpush.bf16.msra.mxu0 %v1375
    %1790 = vmatpush.bf16.msra.mxu0 %v1374
    %1791 = vmatmul.bf16.gmra.mxu0 %v159
    %v1792 = vpop.f32.mrf.mxu0
    %v1793 = vadd.f32 %v1780, %v1792
    %v1794 = vpop.f32.mrf.mxu0
    %1795 = vdwg.mxu0
    %1796 = vmatpush.bf16.msra.mxu0 %v1389
    %1797 = vmatpush.bf16.msra.mxu0 %v1388
    %1798 = vmatpush.bf16.msra.mxu0 %v1387
    %1799 = vmatpush.bf16.msra.mxu0 %v1386
    %1800 = vmatpush.bf16.msra.mxu0 %v1385
    %1801 = vmatpush.bf16.msra.mxu0 %v1384
    %1802 = vmatpush.bf16.msra.mxu0 %v1383
    %1803 = vmatpush.bf16.msra.mxu0 %v1382
    %1804 = vmatmul.bf16.gmra.mxu0 %v160
    %v1805 = vpop.f32.mrf.mxu0
    %v1806 = vadd.f32 %v1793, %v1805
    %v1807 = vpop.f32.mrf.mxu0
    %1808 = vdwg.mxu0
    %1809 = vmatpush.bf16.msra.mxu0 %v1397
    %1810 = vmatpush.bf16.msra.mxu0 %v1396
    %1811 = vmatpush.bf16.msra.mxu0 %v1395
    %1812 = vmatpush.bf16.msra.mxu0 %v1394
    %1813 = vmatpush.bf16.msra.mxu0 %v1393
    %1814 = vmatpush.bf16.msra.mxu0 %v1392
    %1815 = vmatpush.bf16.msra.mxu0 %v1391
    %1816 = vmatpush.bf16.msra.mxu0 %v1390
    %1817 = vmatmul.bf16.gmra.mxu0 %v161
    %v1818 = vpop.f32.mrf.mxu0
    %v1819 = vadd.f32 %v1806, %v1818
    %v1820 = vpop.f32.mrf.mxu0
    %1821 = vdwg.mxu0
    %1822 = vmatpush.bf16.msra.mxu0 %v1405
    %1823 = vmatpush.bf16.msra.mxu0 %v1404
    %1824 = vmatpush.bf16.msra.mxu0 %v1403
    %1825 = vmatpush.bf16.msra.mxu0 %v1402
    %1826 = vmatpush.bf16.msra.mxu0 %v1401
    %1827 = vmatpush.bf16.msra.mxu0 %v1400
    %1828 = vmatpush.bf16.msra.mxu0 %v1399
    %1829 = vmatpush.bf16.msra.mxu0 %v1398
    %1830 = vmatmul.bf16.gmra.mxu0 %v162
    %v1831 = vpop.f32.mrf.mxu0
    %v1832 = vadd.f32 %v1819, %v1831
    %v1833 = vpop.f32.mrf.mxu0
    %1834 = vdwg.mxu0
    %1835 = vmatpush.bf16.msra.mxu0 %v1413
    %1836 = vmatpush.bf16.msra.mxu0 %v1412
    %1837 = vmatpush.bf16.msra.mxu0 %v1411
    %1838 = vmatpush.bf16.msra.mxu0 %v1410
    %1839 = vmatpush.bf16.msra.mxu0 %v1409
    %1840 = vmatpush.bf16.msra.mxu0 %v1408
    %1841 = vmatpush.bf16.msra.mxu0 %v1407
    %1842 = vmatpush.bf16.msra.mxu0 %v1406
    %1843 = vmatmul.bf16.gmra.mxu0 %v163
    %v1844 = vpop.f32.mrf.mxu0
    %v1845 = vadd.f32 %v1832, %v1844
    %v1846 = vpop.f32.mrf.mxu0
    %1847 = vdwg.mxu0
    %1848 = vmatpush.bf16.msra.mxu0 %v1421
    %1849 = vmatpush.bf16.msra.mxu0 %v1420
    %1850 = vmatpush.bf16.msra.mxu0 %v1419
    %1851 = vmatpush.bf16.msra.mxu0 %v1418
    %1852 = vmatpush.bf16.msra.mxu0 %v1417
    %1853 = vmatpush.bf16.msra.mxu0 %v1416
    %1854 = vmatpush.bf16.msra.mxu0 %v1415
    %1855 = vmatpush.bf16.msra.mxu0 %v1414
    %1856 = vmatmul.bf16.gmra.mxu0 %v164
    %v1857 = vpop.f32.mrf.mxu0
    %v1858 = vadd.f32 %v1845, %v1857
    %v1859 = vpop.f32.mrf.mxu0
    %1860 = vdwg.mxu0
    %1861 = vmatpush.bf16.msra.mxu0 %v1429
    %1862 = vmatpush.bf16.msra.mxu0 %v1428
    %1863 = vmatpush.bf16.msra.mxu0 %v1427
    %1864 = vmatpush.bf16.msra.mxu0 %v1426
    %1865 = vmatpush.bf16.msra.mxu0 %v1425
    %1866 = vmatpush.bf16.msra.mxu0 %v1424
    %1867 = vmatpush.bf16.msra.mxu0 %v1423
    %1868 = vmatpush.bf16.msra.mxu0 %v1422
    %1869 = vmatmul.bf16.gmra.mxu0 %v165
    %v1870 = vpop.f32.mrf.mxu0
    %v1871 = vadd.f32 %v1858, %v1870
    %v1872 = vpop.f32.mrf.mxu0
    %1873 = vdwg.mxu0
    %1874 = vmatpush.bf16.msra.mxu0 %v1437
    %1875 = vmatpush.bf16.msra.mxu0 %v1436
    %1876 = vmatpush.bf16.msra.mxu0 %v1435
    %1877 = vmatpush.bf16.msra.mxu0 %v1434
    %1878 = vmatpush.bf16.msra.mxu0 %v1433
    %1879 = vmatpush.bf16.msra.mxu0 %v1432
    %1880 = vmatpush.bf16.msra.mxu0 %v1431
    %1881 = vmatpush.bf16.msra.mxu0 %v1430
    %1882 = vmatmul.bf16.gmra.mxu0 %v166
    %v1883 = vpop.f32.mrf.mxu0
    %v1884 = vadd.f32 %v1871, %v1883
    %v1885 = vpop.f32.mrf.mxu0
    %1886 = vdwg.mxu0
    %1887 = vmatpush.bf16.msra.mxu0 %v1445
    %1888 = vmatpush.bf16.msra.mxu0 %v1444
    %1889 = vmatpush.bf16.msra.mxu0 %v1443
    %1890 = vmatpush.bf16.msra.mxu0 %v1442
    %1891 = vmatpush.bf16.msra.mxu0 %v1441
    %1892 = vmatpush.bf16.msra.mxu0 %v1440
    %1893 = vmatpush.bf16.msra.mxu0 %v1439
    %1894 = vmatpush.bf16.msra.mxu0 %v1438
    %1895 = vmatmul.bf16.gmra.mxu0 %v167
    %v1896 = vpop.f32.mrf.mxu0
    %v1897 = vadd.f32 %v1884, %v1896
    %v1898 = vpop.f32.mrf.mxu0
    %1899 = vdwg.mxu0
    %1900 = vmatpush.bf16.msra.mxu0 %v1453
    %1901 = vmatpush.bf16.msra.mxu0 %v1452
    %1902 = vmatpush.bf16.msra.mxu0 %v1451
    %1903 = vmatpush.bf16.msra.mxu0 %v1450
    %1904 = vmatpush.bf16.msra.mxu0 %v1449
    %1905 = vmatpush.bf16.msra.mxu0 %v1448
    %1906 = vmatpush.bf16.msra.mxu0 %v1447
    %1907 = vmatpush.bf16.msra.mxu0 %v1446
    %1908 = vmatmul.bf16.gmra.mxu0 %v168
    %v1909 = vpop.f32.mrf.mxu0
    %v1910 = vadd.f32 %v1897, %v1909
    %v1911 = vpop.f32.mrf.mxu0
    %1912 = vdwg.mxu0
    %1913 = vmatpush.bf16.msra.mxu0 %v1461
    %1914 = vmatpush.bf16.msra.mxu0 %v1460
    %1915 = vmatpush.bf16.msra.mxu0 %v1459
    %1916 = vmatpush.bf16.msra.mxu0 %v1458
    %1917 = vmatpush.bf16.msra.mxu0 %v1457
    %1918 = vmatpush.bf16.msra.mxu0 %v1456
    %1919 = vmatpush.bf16.msra.mxu0 %v1455
    %1920 = vmatpush.bf16.msra.mxu0 %v1454
    %1921 = vmatmul.bf16.gmra.mxu0 %v169
    %v1922 = vpop.f32.mrf.mxu0
    %v1923 = vadd.f32 %v1910, %v1922
    %v1924 = vpop.f32.mrf.mxu0
    %1925 = vdwg.mxu0
    %1926 = vmatpush.bf16.msra.mxu0 %v1469
    %1927 = vmatpush.bf16.msra.mxu0 %v1468
    %1928 = vmatpush.bf16.msra.mxu0 %v1467
    %1929 = vmatpush.bf16.msra.mxu0 %v1466
    %1930 = vmatpush.bf16.msra.mxu0 %v1465
    %1931 = vmatpush.bf16.msra.mxu0 %v1464
    %1932 = vmatpush.bf16.msra.mxu0 %v1463
    %1933 = vmatpush.bf16.msra.mxu0 %v1462
    %1934 = vmatmul.bf16.gmra.mxu0 %v170
    %v1935 = vpop.f32.mrf.mxu0
    %v1936 = vadd.f32 %v1923, %v1935
    %v1937 = vpop.f32.mrf.mxu0
    %1938 = vdwg.mxu0
    %1939 = vmatpush.bf16.msra.mxu0 %v1477
    %1940 = vmatpush.bf16.msra.mxu0 %v1476
    %1941 = vmatpush.bf16.msra.mxu0 %v1475
    %1942 = vmatpush.bf16.msra.mxu0 %v1474
    %1943 = vmatpush.bf16.msra.mxu0 %v1473
    %1944 = vmatpush.bf16.msra.mxu0 %v1472
    %1945 = vmatpush.bf16.msra.mxu0 %v1471
    %1946 = vmatpush.bf16.msra.mxu0 %v1470
    %1947 = vmatmul.bf16.gmra.mxu0 %v171
    %v1948 = vpop.f32.mrf.mxu0
    %v1949 = vadd.f32 %v1936, %v1948
    %v1950 = vpop.f32.mrf.mxu0
    %1951 = vdwg.mxu0
    %1952 = vmatpush.bf16.msra.mxu0 %v1485
    %1953 = vmatpush.bf16.msra.mxu0 %v1484
    %1954 = vmatpush.bf16.msra.mxu0 %v1483
    %1955 = vmatpush.bf16.msra.mxu0 %v1482
    %1956 = vmatpush.bf16.msra.mxu0 %v1481
    %1957 = vmatpush.bf16.msra.mxu0 %v1480
    %1958 = vmatpush.bf16.msra.mxu0 %v1479
    %1959 = vmatpush.bf16.msra.mxu0 %v1478
    %1960 = vmatmul.bf16.gmra.mxu0 %v172
    %v1961 = vpop.f32.mrf.mxu0
    %v1962 = vadd.f32 %v1949, %v1961
    %v1963 = vpop.f32.mrf.mxu0
    %1964 = vdwg.mxu0
    %1965 = vmatpush.bf16.msra.mxu0 %v1493
    %1966 = vmatpush.bf16.msra.mxu0 %v1492
    %1967 = vmatpush.bf16.msra.mxu0 %v1491
    %1968 = vmatpush.bf16.msra.mxu0 %v1490
    %1969 = vmatpush.bf16.msra.mxu0 %v1489
    %1970 = vmatpush.bf16.msra.mxu0 %v1488
    %1971 = vmatpush.bf16.msra.mxu0 %v1487
    %1972 = vmatpush.bf16.msra.mxu0 %v1486
    %1973 = vmatmul.bf16.gmra.mxu0 %v173
    %v1974 = vpop.f32.mrf.mxu0
    %v1975 = vadd.f32 %v1962, %v1974
    %v1976 = vpop.f32.mrf.mxu0
    %1977 = vdwg.mxu0
    %1978 = vmatpush.bf16.msra.mxu0 %v1501
    %1979 = vmatpush.bf16.msra.mxu0 %v1500
    %1980 = vmatpush.bf16.msra.mxu0 %v1499
    %1981 = vmatpush.bf16.msra.mxu0 %v1498
    %1982 = vmatpush.bf16.msra.mxu0 %v1497
    %1983 = vmatpush.bf16.msra.mxu0 %v1496
    %1984 = vmatpush.bf16.msra.mxu0 %v1495
    %1985 = vmatpush.bf16.msra.mxu0 %v1494
    %1986 = vmatmul.bf16.gmra.mxu0 %v174
    %v1987 = vpop.f32.mrf.mxu0
    %v1988 = vadd.f32 %v1975, %v1987
    %v1989 = vpop.f32.mrf.mxu0
    %1990 = vdwg.mxu0
    %1991 = vmatpush.bf16.msra.mxu0 %v1509
    %1992 = vmatpush.bf16.msra.mxu0 %v1508
    %1993 = vmatpush.bf16.msra.mxu0 %v1507
    %1994 = vmatpush.bf16.msra.mxu0 %v1506
    %1995 = vmatpush.bf16.msra.mxu0 %v1505
    %1996 = vmatpush.bf16.msra.mxu0 %v1504
    %1997 = vmatpush.bf16.msra.mxu0 %v1503
    %1998 = vmatpush.bf16.msra.mxu0 %v1502
    %1999 = vmatmul.bf16.gmra.mxu0 %v175
    %v2000 = vpop.f32.mrf.mxu0
    %v2001 = vadd.f32 %v1988, %v2000
    %v2002 = vpop.f32.mrf.mxu0
    %2003 = vdwg.mxu0
    %2004 = vmatpush.bf16.msra.mxu0 %v1517
    %2005 = vmatpush.bf16.msra.mxu0 %v1516
    %2006 = vmatpush.bf16.msra.mxu0 %v1515
    %2007 = vmatpush.bf16.msra.mxu0 %v1514
    %2008 = vmatpush.bf16.msra.mxu0 %v1513
    %2009 = vmatpush.bf16.msra.mxu0 %v1512
    %2010 = vmatpush.bf16.msra.mxu0 %v1511
    %2011 = vmatpush.bf16.msra.mxu0 %v1510
    %2012 = vmatmul.bf16.gmra.mxu0 %v176
    %v2013 = vpop.f32.mrf.mxu0
    %v2014 = vadd.f32 %v2001, %v2013
    %v2015 = vpop.f32.mrf.mxu0
    %2016 = vdwg.mxu0
    %2017 = vmatpush.bf16.msra.mxu0 %v1525
    %2018 = vmatpush.bf16.msra.mxu0 %v1524
    %2019 = vmatpush.bf16.msra.mxu0 %v1523
    %2020 = vmatpush.bf16.msra.mxu0 %v1522
    %2021 = vmatpush.bf16.msra.mxu0 %v1521
    %2022 = vmatpush.bf16.msra.mxu0 %v1520
    %2023 = vmatpush.bf16.msra.mxu0 %v1519
    %2024 = vmatpush.bf16.msra.mxu0 %v1518
    %2025 = vmatmul.bf16.gmra.mxu0 %v177
    %v2026 = vpop.f32.mrf.mxu0
    %v2027 = vadd.f32 %v2014, %v2026
    %v2028 = vpop.f32.mrf.mxu0
    %2029 = vdwg.mxu0
    %v2030 = vld [vmem:[%s3] sm:$0xff]
    %v2031 = vld [vmem:[%s3 + $0x8] sm:$0xff]
    %v2032 = vld [vmem:[%s3 + $0x10] sm:$0xff]
    %v2033 = vld [vmem:[%s3 + $0x18] sm:$0xff]
    %v2034 = vld [vmem:[%s3 + $0x20] sm:$0xff]
    %v2035 = vld [vmem:[%s3 + $0x28] sm:$0xff]
    %v2036 = vld [vmem:[%s3 + $0x30] sm:$0xff]
    %v2037 = vld [vmem:[%s3 + $0x38] sm:$0xff]
    %v2038 = vld [vmem:[%s3 + $0x40] sm:$0xff]
    %v2039 = vld [vmem:[%s3 + $0x48] sm:$0xff]
    %v2040 = vld [vmem:[%s3 + $0x50] sm:$0xff]
    %v2041 = vld [vmem:[%s3 + $0x58] sm:$0xff]
    %v2042 = vld [vmem:[%s3 + $0x60] sm:$0xff]
    %v2043 = vld [vmem:[%s3 + $0x68] sm:$0xff]
    %v2044 = vld [vmem:[%s3 + $0x70] sm:$0xff]
    %v2045 = vld [vmem:[%s3 + $0x78] sm:$0xff]
    %v2046 = vld [vmem:[%s4] sm:$0x1]
    %v2048 = vperm.slane %v2046, 0
    %2050 = vmatpush.msra.mxu0 %v2045
    %2051 = vmatpush.msra.mxu0 %v2044
    %2052 = vmatpush.msra.mxu0 %v2043
    %2053 = vmatpush.msra.mxu0 %v2042
    %2054 = vmatpush.msra.mxu0 %v2041
    %2055 = vmatpush.msra.mxu0 %v2040
    %2056 = vmatpush.msra.mxu0 %v2039
    %2057 = vmatpush.msra.mxu0 %v2038
    %2058 = vmatpush.msra.mxu0 %v2037
    %2059 = vmatpush.msra.mxu0 %v2036
    %2060 = vmatpush.msra.mxu0 %v2035
    %2061 = vmatpush.msra.mxu0 %v2034
    %2062 = vmatpush.msra.mxu0 %v2033
    %2063 = vmatpush.msra.mxu0 %v2032
    %2064 = vmatpush.msra.mxu0 %v2031
    %2065 = vmatpush.msra.mxu0 %v2030
    %2066 = vmatmul.f32.gmra.mxu0 %v2027
    %v2067 = vpop.f32.mrf.mxu0
    %v2068 = vadd.f32 %v2048, %v2067
    %2069 = vdwg.mxu0
    %v2070 = vmax.f32 %v2068, 0.0
    %v2071 = vld [vmem:[%s5] sm:$0xff]
    %v2072 = vld [vmem:[%s5 + $0x8] sm:$0xff]
    %v2073 = vld [vmem:[%s5 + $0x10] sm:$0xff]
    %v2074 = vld [vmem:[%s5 + $0x18] sm:$0xff]
    %v2075 = vld [vmem:[%s5 + $0x20] sm:$0xff]
    %v2076 = vld [vmem:[%s5 + $0x28] sm:$0xff]
    %v2077 = vld [vmem:[%s5 + $0x30] sm:$0xff]
    %v2078 = vld [vmem:[%s5 + $0x38] sm:$0xff]
    %v2079 = vld [vmem:[%s5 + $0x40] sm:$0xff]
    %v2080 = vld [vmem:[%s5 + $0x48] sm:$0xff]
    %v2081 = vld [vmem:[%s5 + $0x50] sm:$0xff]
    %v2082 = vld [vmem:[%s5 + $0x58] sm:$0xff]
    %v2083 = vld [vmem:[%s5 + $0x60] sm:$0xff]
    %v2084 = vld [vmem:[%s5 + $0x68] sm:$0xff]
    %v2085 = vld [vmem:[%s5 + $0x70] sm:$0xff]
    %v2086 = vld [vmem:[%s5 + $0x78] sm:$0xff]
    %v2087 = vld [vmem:[%s6] sm:$0x1]
    %v2089 = vperm.slane %v2087, 0
    %2091 = vmatpush.msra.mxu0 %v2086
    %2092 = vmatpush.msra.mxu0 %v2085
    %2093 = vmatpush.msra.mxu0 %v2084
    %2094 = vmatpush.msra.mxu0 %v2083
    %2095 = vmatpush.msra.mxu0 %v2082
    %2096 = vmatpush.msra.mxu0 %v2081
    %2097 = vmatpush.msra.mxu0 %v2080
    %2098 = vmatpush.msra.mxu0 %v2079
    %2099 = vmatpush.msra.mxu0 %v2078
    %2100 = vmatpush.msra.mxu0 %v2077
    %2101 = vmatpush.msra.mxu0 %v2076
    %2102 = vmatpush.msra.mxu0 %v2075
    %2103 = vmatpush.msra.mxu0 %v2074
    %2104 = vmatpush.msra.mxu0 %v2073
    %2105 = vmatpush.msra.mxu0 %v2072
    %2106 = vmatpush.msra.mxu0 %v2071
    %2107 = vmatmul.f32.gmra.mxu0 %v2070
    %v2108 = vpop.f32.mrf.mxu0
    %v2109 = vadd.f32 %v2089, %v2108
    %2110 = vdwg.mxu0
    %2111 = vmax.xlane.f32.xlu0 %v2109
    %v2112 = vpop.xlane.xlu0 %2111
    %v2113 = vsub.f32 %v2109, %v2112
    %v2114 = vmul.f32 %v2113, 1.442695
    %v2115 = vpow.pop %v2114
    %2116 = vadd.xlane.f32.xlu0 %v2115
    %v2117 = vpop.xlane.xlu0 %2116
    %v2118 = vrcp.pop %v2117
    %v2119 = vmul.f32 %v2117, %v2118
    %v2120 = vsub.f32 1.0, %v2119
    %v2121 = vmul.f32 %v2118, %v2120
    %v2122 = vadd.f32 %v2118, %v2121
    %vm2123 = vweird.f32 %v2117
    %vm2124 = vweird.f32 %v2118
    %vm2125 = vmor %vm2123, %vm2124
    %v2126 = vsel %vm2125, %v2118, %v2122
    %v2127 = vand.u32 2147483647, %v2117
    %vm2128 = vcmp.eq.f32.partialorder %v2127, 8.507059e+37
    %v2129 = vand.u32 %v2117, 2147483648
    %v2130 = vor.u32 1.1754944e-38, %v2129
    %v2131 = vsel %vm2128, %v2130, %v2126
    %v2132 = vmul.f32 %v2115, %v2131
    %2133 = vst [vmem:[#allocation2] sm:$0xff] %v2132
    // Predicated region
    $region30: #{logistic_regression_relu.1} parent=1 // pred_check
      _
    $region31: #{logistic_regression_relu.1} parent=1 // pred_check_branch
      %2135 = sbr.rel (0) target = $region33
    $region32: #{logistic_regression_relu.1} parent=1 // pred_region
      %2137 = vsyncadd [#allocation3], 96
      %s2138 = sshll.u32 [#allocation2], 4
      %s2139 = int_to_ptr.vmem [resolvable:$true] %s2138
      %s2140 = sshll.u32 %s7, 4
      %s2141 = int_to_ptr.hbm [resolvable:$true] %s2140
      %2146 = dma.vmem_to_hbm [thread:$0]  %s2139, 32, %s2141, [#allocation3], 32, 32, 2
    $region33: #{logistic_regression_relu.1} parent=1 // pred_fallthru
      _
    // Predicated region
    $region34: #{logistic_regression_relu.1} parent=1 // pred_check
      _
    $region35: #{logistic_regression_relu.1} parent=1 // pred_check_branch
      %2148 = sbr.rel (0) target = $region37
    $region36: #{logistic_regression_relu.1} parent=1 // pred_region
      %2150 = dma.done [#allocation3], 128
    $region37: #{logistic_regression_relu.1} parent=1 // pred_fallthru
      _
    %2151 = vsyncpa [#allocation3], 1

</llo_original>
